<compile_context>
chip_gen: v5e
topology: v5e:2x2
jax: 0.10.0
libtpu: 0.0.40
codegen_flags: <defaults>
</compile_context>

<pallas_src>
import functools

import jax
import jax.numpy as jnp
from jax import lax
from jax.experimental import pallas as pl
from jax.experimental.pallas import tpu as pltpu

LANE = 128  # per-gate lane block (one vreg width)


# ----------------------------- Pallas kernel ------------------------------- #
def actor_rnn_kernel(x_ref, w1_ref, b1_ref,
                     wih_ref, bi_ref,
                     whh_ref, bhhn_ref,
                     w2_ref, b2_ref,
                     out_ref, hs_ref, *, T, B):
    G = LANE

    # ---- hoisted non-recurrent input path (all timesteps at once) ----
    x_all = x_ref[...]                                                  # (T*B, D)
    a = jnp.maximum(
        jnp.dot(x_all, w1_ref[...], preferred_element_type=jnp.float32)
        + b1_ref[...], 0.0)                                             # fc1 + ReLU

    # Single fused input-to-hidden projection for all three gates.
    # wih_ref is (H_in, 3*128) with each gate zero-padded to a 128-lane block;
    # bi_ref already folds bih (+ bhh_r / bhh_z).  Splits are vreg-aligned.
    gi = jnp.dot(a, wih_ref[...], preferred_element_type=jnp.float32) + bi_ref[...]
    gi_r = gi[:, 0:G]
    gi_z = gi[:, G:2 * G]
    gi_n = gi[:, 2 * G:3 * G]

    whh = whh_ref[...]                                                  # (128, 384)
    bhh_n = jnp.broadcast_to(bhhn_ref[...], (B, G))                     # hoisted

    # ---- recurrent path: one MXU push per step, fully unrolled ----
    h = jnp.zeros((B, G), jnp.float32)   # actor_rnn_hidden starts as None -> zeros
    for t in range(T):
        lo, hi = t * B, (t + 1) * B      # static, sublane-aligned (B multiple of 8)
        gh = jnp.dot(h, whh, preferred_element_type=jnp.float32)        # (B, 384)
        r = jax.nn.sigmoid(gi_r[lo:hi] + gh[:, 0:G])
        z = jax.nn.sigmoid(gi_z[lo:hi] + gh[:, G:2 * G])
        n = jnp.tanh(gi_n[lo:hi] + r * (gh[:, 2 * G:3 * G] + bhh_n))
        h = (1.0 - z) * n + z * h
        hs_ref[lo:hi, :] = h                                            # unmasked vst

    # ---- hoisted fc2: one bulk matmul + single lane-dense slab store ----
    out_ref[...] = (jnp.dot(hs_ref[...], w2_ref[...],
                            preferred_element_type=jnp.float32)
                    + b2_ref[...]).astype(out_ref.dtype)


# ------------------------------- wrapper ------------------------------------ #
def actor_rnn_forward(s, params):
    """s: (B, T, state_dim+1) float32 -> logits (B, T, action_dim) float32."""
    B0, T, D = s.shape
    H = params["w1"].shape[1]
    A = params["w2"].shape[1]
    G = LANE

    # Pad batch to a multiple of 8 sublanes; padded rows are independent & discarded.
    B = ((B0 + 7) // 8) * 8
    x = jnp.transpose(s, (1, 0, 2)).astype(jnp.float32)                 # (T, B0, D)
    if B != B0:
        x = jnp.pad(x, ((0, 0), (0, B - B0), (0, 0)))                   # (T, B, D)
    x = x.reshape(T * B, D)                                             # time-major slab

    f32 = jnp.float32
    wih, whh = params["wih"], params["whh"]          # (H, 3H), gate order r,z,n
    bih, bhh = params["bih"], params["bhh"]          # (1, 3H)

    # Fused, 128-lane-padded gate weights / biases.
    wih_pad = jnp.zeros((H, 3 * G), f32)
    wih_pad = wih_pad.at[:, 0:H].set(wih[:, 0:H])
    wih_pad = wih_pad.at[:, G:G + H].set(wih[:, H:2 * H])
    wih_pad = wih_pad.at[:, 2 * G:2 * G + H].set(wih[:, 2 * H:3 * H])

    bi_pad = jnp.zeros((1, 3 * G), f32)
    bi_pad = bi_pad.at[:, 0:H].set(bih[:, 0:H] + bhh[:, 0:H])           # fold bhh_r
    bi_pad = bi_pad.at[:, G:G + H].set(bih[:, H:2 * H] + bhh[:, H:2 * H])  # fold bhh_z
    bi_pad = bi_pad.at[:, 2 * G:2 * G + H].set(bih[:, 2 * H:3 * H])     # bhh_n stays separate

    whh_pad = jnp.zeros((G, 3 * G), f32)                                # rows padded to 128
    whh_pad = whh_pad.at[:H, 0:H].set(whh[:, 0:H])
    whh_pad = whh_pad.at[:H, G:G + H].set(whh[:, H:2 * H])
    whh_pad = whh_pad.at[:H, 2 * G:2 * G + H].set(whh[:, 2 * H:3 * H])

    bhhn_pad = jnp.zeros((1, G), f32).at[:, :H].set(bhh[:, 2 * H:3 * H])

    # Lane-dense fc2: pad input rows and output lanes to 128.
    w2_pad = jnp.zeros((G, G), f32).at[:H, :A].set(params["w2"])
    b2_pad = jnp.zeros((1, G), f32).at[:, :A].set(params["b2"])

    args = (x, params["w1"], params["b1"],
            wih_pad, bi_pad, whh_pad, bhhn_pad, w2_pad, b2_pad)

    vmem = pl.BlockSpec(memory_space=pltpu.MemorySpace.VMEM)
    out = pl.pallas_call(
        functools.partial(actor_rnn_kernel, T=T, B=B),
        out_shape=jax.ShapeDtypeStruct((T * B, G), jnp.float32),
        in_specs=[vmem] * len(args),
        out_specs=vmem,
        scratch_shapes=[pltpu.VMEM((T * B, G), jnp.float32)],
    )(*args)

    out = out.reshape(T, B, G)[:, :B0, :A]           # drop batch + lane padding
    return jnp.transpose(out, (1, 0, 2))             # (B0, T, A)


# ------------------------ deterministic parameter init ---------------------- #
def _orthogonal(key, shape, gain):
    """Matches torch.nn.init.orthogonal_ semantics for 2-D matrices."""
    rows, cols = shape
    a = jax.random.normal(key, (rows, cols), jnp.float32)
    flat = a.T if rows < cols else a
    q, r = jnp.linalg.qr(flat)
    d = jnp.diag(r)
    q = q * jnp.where(d == 0, 1.0, jnp.sign(d))      # guard against zero diagonal
    if rows < cols:
        q = q.T
    return gain * q


def init_params(key, state_dim, hidden_dim, action_dim):
    d_in = state_dim + 1
    k1, k2, k3, k4 = jax.random.split(key, 4)
    g = float(jnp.sqrt(2.0))
    # Same shapes as the PyTorch module; orthogonal init, zero biases.
    w_fc1 = _orthogonal(k1, (hidden_dim, d_in), g)            # fc1.weight (H, D_in)
    w_ih = _orthogonal(k2, (3 * hidden_dim, hidden_dim), g)   # gru.weight_ih_l0
    w_hh = _orthogonal(k3, (3 * hidden_dim, hidden_dim), g)   # gru.weight_hh_l0
    w_fc2 = _orthogonal(k4, (action_dim, hidden_dim), 0.01)   # fc2.weight (A, H)
    return {
        # pre-transposed for the kernel: (in_dim, out_dim)
        "w1": w_fc1.T, "b1": jnp.zeros((1, hidden_dim), jnp.float32),
        "wih": w_ih.T, "bih": jnp.zeros((1, 3 * hidden_dim), jnp.float32),
        "whh": w_hh.T, "bhh": jnp.zeros((1, 3 * hidden_dim), jnp.float32),
        "w2": w_fc2.T, "b2": jnp.zeros((1, action_dim), jnp.float32),
    }


# --------------------------- pure-JAX reference ------------------------------ #
def actor_rnn_reference(s, params):
    x = jnp.maximum(jnp.einsum("btd,dh->bth", s, params["w1"]) + params["b1"], 0.0)
    H = params["whh"].shape[0]

    def cell(h, x_t):
        gi = x_t @ params["wih"] + params["bih"]
        gh = h @ params["whh"] + params["bhh"]
        r = jax.nn.sigmoid(gi[:, :H] + gh[:, :H])
        z = jax.nn.sigmoid(gi[:, H:2 * H] + gh[:, H:2 * H])
        n = jnp.tanh(gi[:, 2 * H:] + r * gh[:, 2 * H:])
        h_new = (1.0 - z) * n + z * h
        return h_new, h_new

    B = s.shape[0]
    h0 = jnp.zeros((B, H), jnp.float32)
    _, hs = lax.scan(cell, h0, jnp.transpose(x, (1, 0, 2)))   # (T, B, H)
    out = jnp.transpose(hs, (1, 0, 2))                        # (B, T, H)
    return jnp.einsum("bth,ha->bta", out, params["w2"]) + params["b2"]


# ----------------------------------- main ------------------------------------ #
if __name__ == "__main__":
    STATE_DIM, HIDDEN_DIM, ACTION_DIM = 31, 32, 8
    B, T = 2, 8

    key = jax.random.PRNGKey(0)
    k_param, k_state = jax.random.split(key)
    params = init_params(k_param, STATE_DIM, HIDDEN_DIM, ACTION_DIM)
    s = jax.random.normal(k_state, (B, T, STATE_DIM + 1), jnp.float32)

    logits = jax.block_until_ready(actor_rnn_forward(s, params))
    ref = jax.block_until_ready(actor_rnn_reference(s, params))

    assert logits.shape == (B, T, ACTION_DIM)
    assert jnp.allclose(logits, ref, atol=1e-4, rtol=1e-4), "mismatch vs reference"
    print("KERNEL_OK")
</pallas_src>

<mosaic_0001>
module attributes {stable_mosaic.version = 11 : i64} {
  func.func @actor_rnn_kernel(%arg0: memref<64x32xf32, #tpu.memory_space<vmem>>, %arg1: memref<32x32xf32, #tpu.memory_space<vmem>>, %arg2: memref<1x32xf32, #tpu.memory_space<vmem>>, %arg3: memref<32x384xf32, #tpu.memory_space<vmem>>, %arg4: memref<1x384xf32, #tpu.memory_space<vmem>>, %arg5: memref<128x384xf32, #tpu.memory_space<vmem>>, %arg6: memref<1x128xf32, #tpu.memory_space<vmem>>, %arg7: memref<128x128xf32, #tpu.memory_space<vmem>>, %arg8: memref<1x128xf32, #tpu.memory_space<vmem>>, %arg9: memref<64x128xf32, #tpu.memory_space<vmem>>, %arg10: memref<64x128xf32, #tpu.memory_space<vmem>>) attributes {dimension_semantics = [], scalar_prefetch = 0 : i64, scratch_operands = 1 : i64, tpu.core_type = #tpu.core_type<tc>} {
    %c0 = arith.constant 0 : index
    %c0_0 = arith.constant 0 : index
    %0 = vector.load %arg0[%c0, %c0_0] : memref<64x32xf32, #tpu.memory_space<vmem>>, vector<64x32xf32>
    %c0_1 = arith.constant 0 : index
    %c0_2 = arith.constant 0 : index
    %1 = vector.load %arg1[%c0_1, %c0_2] : memref<32x32xf32, #tpu.memory_space<vmem>>, vector<32x32xf32>
    %cst = arith.constant dense<0.000000e+00> : vector<64x32xf32>
    %2 = tpu.matmul %0, %1, %cst {dimension_numbers = #tpu.dot_dimension_numbers<[1], [0], [0], [1], [0, 0, 1, 1], [], []>} : vector<64x32xf32>, vector<32x32xf32>, vector<64x32xf32> -> vector<64x32xf32>
    %c0_3 = arith.constant 0 : index
    %c0_4 = arith.constant 0 : index
    %3 = vector.load %arg2[%c0_3, %c0_4] : memref<1x32xf32, #tpu.memory_space<vmem>>, vector<1x32xf32>
    %4 = vector.broadcast %3 : vector<1x32xf32> to vector<64x32xf32>
    %5 = arith.addf %2, %4 : vector<64x32xf32>
    %cst_5 = arith.constant 0.000000e+00 : f32
    %6 = vector.broadcast %cst_5 : f32 to vector<64x32xf32>
    %7 = arith.maximumf %5, %6 : vector<64x32xf32>
    %c0_6 = arith.constant 0 : index
    %c0_7 = arith.constant 0 : index
    %8 = vector.load %arg3[%c0_6, %c0_7] : memref<32x384xf32, #tpu.memory_space<vmem>>, vector<32x384xf32>
    %cst_8 = arith.constant dense<0.000000e+00> : vector<64x384xf32>
    %9 = tpu.matmul %7, %8, %cst_8 {dimension_numbers = #tpu.dot_dimension_numbers<[1], [0], [0], [1], [0, 0, 1, 1], [], []>} : vector<64x32xf32>, vector<32x384xf32>, vector<64x384xf32> -> vector<64x384xf32>
    %c0_9 = arith.constant 0 : index
    %c0_10 = arith.constant 0 : index
    %10 = vector.load %arg4[%c0_9, %c0_10] : memref<1x384xf32, #tpu.memory_space<vmem>>, vector<1x384xf32>
    %11 = vector.broadcast %10 : vector<1x384xf32> to vector<64x384xf32>
    %12 = arith.addf %9, %11 : vector<64x384xf32>
    %13 = vector.extract_strided_slice %12 {offsets = [0, 0], sizes = [64, 128], strides = [1, 1]} : vector<64x384xf32> to vector<64x128xf32>
    %14 = vector.extract_strided_slice %12 {offsets = [0, 128], sizes = [64, 128], strides = [1, 1]} : vector<64x384xf32> to vector<64x128xf32>
    %15 = vector.extract_strided_slice %12 {offsets = [0, 256], sizes = [64, 128], strides = [1, 1]} : vector<64x384xf32> to vector<64x128xf32>
    %c0_11 = arith.constant 0 : index
    %c0_12 = arith.constant 0 : index
    %16 = vector.load %arg5[%c0_11, %c0_12] : memref<128x384xf32, #tpu.memory_space<vmem>>, vector<128x384xf32>
    %c0_13 = arith.constant 0 : index
    %c0_14 = arith.constant 0 : index
    %17 = vector.load %arg6[%c0_13, %c0_14] : memref<1x128xf32, #tpu.memory_space<vmem>>, vector<1x128xf32>
    %18 = vector.shape_cast %17 : vector<1x128xf32> to vector<1x128xf32>
    %19 = vector.broadcast %18 : vector<1x128xf32> to vector<8x128xf32>
    %cst_15 = arith.constant 0.000000e+00 : f32
    %20 = vector.broadcast %cst_15 : f32 to vector<8x128xf32>
    %cst_16 = arith.constant dense<0.000000e+00> : vector<8x384xf32>
    %21 = tpu.matmul %20, %16, %cst_16 {dimension_numbers = #tpu.dot_dimension_numbers<[1], [0], [0], [1], [0, 0, 1, 1], [], []>} : vector<8x128xf32>, vector<128x384xf32>, vector<8x384xf32> -> vector<8x384xf32>
    %22 = vector.extract_strided_slice %13 {offsets = [0, 0], sizes = [8, 128], strides = [1, 1]} : vector<64x128xf32> to vector<8x128xf32>
    %23 = vector.extract_strided_slice %21 {offsets = [0, 0], sizes = [8, 128], strides = [1, 1]} : vector<8x384xf32> to vector<8x128xf32>
    %24 = arith.addf %22, %23 : vector<8x128xf32>
    %25 = arith.negf %24 : vector<8x128xf32>
    %26 = math.exp %25 : vector<8x128xf32>
    %cst_17 = arith.constant 1.000000e+00 : f32
    %27 = vector.broadcast %cst_17 : f32 to vector<8x128xf32>
    %28 = arith.addf %27, %26 : vector<8x128xf32>
    %29 = arith.divf %27, %28 : vector<8x128xf32>
    %30 = vector.extract_strided_slice %14 {offsets = [0, 0], sizes = [8, 128], strides = [1, 1]} : vector<64x128xf32> to vector<8x128xf32>
    %31 = vector.extract_strided_slice %21 {offsets = [0, 128], sizes = [8, 128], strides = [1, 1]} : vector<8x384xf32> to vector<8x128xf32>
    %32 = arith.addf %30, %31 : vector<8x128xf32>
    %33 = arith.negf %32 : vector<8x128xf32>
    %34 = math.exp %33 : vector<8x128xf32>
    %cst_18 = arith.constant 1.000000e+00 : f32
    %35 = vector.broadcast %cst_18 : f32 to vector<8x128xf32>
    %36 = arith.addf %35, %34 : vector<8x128xf32>
    %37 = arith.divf %35, %36 : vector<8x128xf32>
    %38 = vector.extract_strided_slice %15 {offsets = [0, 0], sizes = [8, 128], strides = [1, 1]} : vector<64x128xf32> to vector<8x128xf32>
    %39 = vector.extract_strided_slice %21 {offsets = [0, 256], sizes = [8, 128], strides = [1, 1]} : vector<8x384xf32> to vector<8x128xf32>
    %40 = arith.addf %39, %19 : vector<8x128xf32>
    %41 = arith.mulf %29, %40 : vector<8x128xf32>
    %42 = arith.addf %38, %41 : vector<8x128xf32>
    %43 = math.tanh %42 : vector<8x128xf32>
    %cst_19 = arith.constant 1.000000e+00 : f32
    %44 = vector.broadcast %cst_19 : f32 to vector<8x128xf32>
    %45 = arith.subf %44, %37 : vector<8x128xf32>
    %46 = arith.mulf %45, %43 : vector<8x128xf32>
    %47 = arith.mulf %37, %20 : vector<8x128xf32>
    %48 = arith.addf %46, %47 : vector<8x128xf32>
    %c0_20 = arith.constant 0 : index
    %c0_21 = arith.constant 0 : index
    %49 = vector.load %arg10[%c0_20, %c0_21] : memref<64x128xf32, #tpu.memory_space<vmem>>, vector<8x128xf32>
    tpu.vector_store %arg10[%c0_20, %c0_21], %48 {strides = array<i32>} : memref<64x128xf32, #tpu.memory_space<vmem>>, vector<8x128xf32>,
    %cst_22 = arith.constant dense<0.000000e+00> : vector<8x384xf32>
    %50 = tpu.matmul %48, %16, %cst_22 {dimension_numbers = #tpu.dot_dimension_numbers<[1], [0], [0], [1], [0, 0, 1, 1], [], []>} : vector<8x128xf32>, vector<128x384xf32>, vector<8x384xf32> -> vector<8x384xf32>
    %51 = vector.extract_strided_slice %13 {offsets = [8, 0], sizes = [8, 128], strides = [1, 1]} : vector<64x128xf32> to vector<8x128xf32>
    %52 = vector.extract_strided_slice %50 {offsets = [0, 0], sizes = [8, 128], strides = [1, 1]} : vector<8x384xf32> to vector<8x128xf32>
    %53 = arith.addf %51, %52 : vector<8x128xf32>
    %54 = arith.negf %53 : vector<8x128xf32>
    %55 = math.exp %54 : vector<8x128xf32>
    %cst_23 = arith.constant 1.000000e+00 : f32
    %56 = vector.broadcast %cst_23 : f32 to vector<8x128xf32>
    %57 = arith.addf %56, %55 : vector<8x128xf32>
    %58 = arith.divf %56, %57 : vector<8x128xf32>
    %59 = vector.extract_strided_slice %14 {offsets = [8, 0], sizes = [8, 128], strides = [1, 1]} : vector<64x128xf32> to vector<8x128xf32>
    %60 = vector.extract_strided_slice %50 {offsets = [0, 128], sizes = [8, 128], strides = [1, 1]} : vector<8x384xf32> to vector<8x128xf32>
    %61 = arith.addf %59, %60 : vector<8x128xf32>
    %62 = arith.negf %61 : vector<8x128xf32>
    %63 = math.exp %62 : vector<8x128xf32>
    %cst_24 = arith.constant 1.000000e+00 : f32
    %64 = vector.broadcast %cst_24 : f32 to vector<8x128xf32>
    %65 = arith.addf %64, %63 : vector<8x128xf32>
    %66 = arith.divf %64, %65 : vector<8x128xf32>
    %67 = vector.extract_strided_slice %15 {offsets = [8, 0], sizes = [8, 128], strides = [1, 1]} : vector<64x128xf32> to vector<8x128xf32>
    %68 = vector.extract_strided_slice %50 {offsets = [0, 256], sizes = [8, 128], strides = [1, 1]} : vector<8x384xf32> to vector<8x128xf32>
    %69 = arith.addf %68, %19 : vector<8x128xf32>
    %70 = arith.mulf %58, %69 : vector<8x128xf32>
    %71 = arith.addf %67, %70 : vector<8x128xf32>
    %72 = math.tanh %71 : vector<8x128xf32>
    %cst_25 = arith.constant 1.000000e+00 : f32
    %73 = vector.broadcast %cst_25 : f32 to vector<8x128xf32>
    %74 = arith.subf %73, %66 : vector<8x128xf32>
    %75 = arith.mulf %74, %72 : vector<8x128xf32>
    %76 = arith.mulf %66, %48 : vector<8x128xf32>
    %77 = arith.addf %75, %76 : vector<8x128xf32>
    %c8 = arith.constant 8 : index
    %c0_26 = arith.constant 0 : index
    %78 = vector.load %arg10[%c8, %c0_26] : memref<64x128xf32, #tpu.memory_space<vmem>>, vector<8x128xf32>
    tpu.vector_store %arg10[%c8, %c0_26], %77 {strides = array<i32>} : memref<64x128xf32, #tpu.memory_space<vmem>>, vector<8x128xf32>,
    %cst_27 = arith.constant dense<0.000000e+00> : vector<8x384xf32>
    %79 = tpu.matmul %77, %16, %cst_27 {dimension_numbers = #tpu.dot_dimension_numbers<[1], [0], [0], [1], [0, 0, 1, 1], [], []>} : vector<8x128xf32>, vector<128x384xf32>, vector<8x384xf32> -> vector<8x384xf32>
    %80 = vector.extract_strided_slice %13 {offsets = [16, 0], sizes = [8, 128], strides = [1, 1]} : vector<64x128xf32> to vector<8x128xf32>
    %81 = vector.extract_strided_slice %79 {offsets = [0, 0], sizes = [8, 128], strides = [1, 1]} : vector<8x384xf32> to vector<8x128xf32>
    %82 = arith.addf %80, %81 : vector<8x128xf32>
    %83 = arith.negf %82 : vector<8x128xf32>
    %84 = math.exp %83 : vector<8x128xf32>
    %cst_28 = arith.constant 1.000000e+00 : f32
    %85 = vector.broadcast %cst_28 : f32 to vector<8x128xf32>
    %86 = arith.addf %85, %84 : vector<8x128xf32>
    %87 = arith.divf %85, %86 : vector<8x128xf32>
    %88 = vector.extract_strided_slice %14 {offsets = [16, 0], sizes = [8, 128], strides = [1, 1]} : vector<64x128xf32> to vector<8x128xf32>
    %89 = vector.extract_strided_slice %79 {offsets = [0, 128], sizes = [8, 128], strides = [1, 1]} : vector<8x384xf32> to vector<8x128xf32>
    %90 = arith.addf %88, %89 : vector<8x128xf32>
    %91 = arith.negf %90 : vector<8x128xf32>
    %92 = math.exp %91 : vector<8x128xf32>
    %cst_29 = arith.constant 1.000000e+00 : f32
    %93 = vector.broadcast %cst_29 : f32 to vector<8x128xf32>
    %94 = arith.addf %93, %92 : vector<8x128xf32>
    %95 = arith.divf %93, %94 : vector<8x128xf32>
    %96 = vector.extract_strided_slice %15 {offsets = [16, 0], sizes = [8, 128], strides = [1, 1]} : vector<64x128xf32> to vector<8x128xf32>
    %97 = vector.extract_strided_slice %79 {offsets = [0, 256], sizes = [8, 128], strides = [1, 1]} : vector<8x384xf32> to vector<8x128xf32>
    %98 = arith.addf %97, %19 : vector<8x128xf32>
    %99 = arith.mulf %87, %98 : vector<8x128xf32>
    %100 = arith.addf %96, %99 : vector<8x128xf32>
    %101 = math.tanh %100 : vector<8x128xf32>
    %cst_30 = arith.constant 1.000000e+00 : f32
    %102 = vector.broadcast %cst_30 : f32 to vector<8x128xf32>
    %103 = arith.subf %102, %95 : vector<8x128xf32>
    %104 = arith.mulf %103, %101 : vector<8x128xf32>
    %105 = arith.mulf %95, %77 : vector<8x128xf32>
    %106 = arith.addf %104, %105 : vector<8x128xf32>
    %c16 = arith.constant 16 : index
    %c0_31 = arith.constant 0 : index
    %107 = vector.load %arg10[%c16, %c0_31] : memref<64x128xf32, #tpu.memory_space<vmem>>, vector<8x128xf32>
    tpu.vector_store %arg10[%c16, %c0_31], %106 {strides = array<i32>} : memref<64x128xf32, #tpu.memory_space<vmem>>, vector<8x128xf32>,
    %cst_32 = arith.constant dense<0.000000e+00> : vector<8x384xf32>
    %108 = tpu.matmul %106, %16, %cst_32 {dimension_numbers = #tpu.dot_dimension_numbers<[1], [0], [0], [1], [0, 0, 1, 1], [], []>} : vector<8x128xf32>, vector<128x384xf32>, vector<8x384xf32> -> vector<8x384xf32>
    %109 = vector.extract_strided_slice %13 {offsets = [24, 0], sizes = [8, 128], strides = [1, 1]} : vector<64x128xf32> to vector<8x128xf32>
    %110 = vector.extract_strided_slice %108 {offsets = [0, 0], sizes = [8, 128], strides = [1, 1]} : vector<8x384xf32> to vector<8x128xf32>
    %111 = arith.addf %109, %110 : vector<8x128xf32>
    %112 = arith.negf %111 : vector<8x128xf32>
    %113 = math.exp %112 : vector<8x128xf32>
    %cst_33 = arith.constant 1.000000e+00 : f32
    %114 = vector.broadcast %cst_33 : f32 to vector<8x128xf32>
    %115 = arith.addf %114, %113 : vector<8x128xf32>
    %116 = arith.divf %114, %115 : vector<8x128xf32>
    %117 = vector.extract_strided_slice %14 {offsets = [24, 0], sizes = [8, 128], strides = [1, 1]} : vector<64x128xf32> to vector<8x128xf32>
    %118 = vector.extract_strided_slice %108 {offsets = [0, 128], sizes = [8, 128], strides = [1, 1]} : vector<8x384xf32> to vector<8x128xf32>
    %119 = arith.addf %117, %118 : vector<8x128xf32>
    %120 = arith.negf %119 : vector<8x128xf32>
    %121 = math.exp %120 : vector<8x128xf32>
    %cst_34 = arith.constant 1.000000e+00 : f32
    %122 = vector.broadcast %cst_34 : f32 to vector<8x128xf32>
    %123 = arith.addf %122, %121 : vector<8x128xf32>
    %124 = arith.divf %122, %123 : vector<8x128xf32>
    %125 = vector.extract_strided_slice %15 {offsets = [24, 0], sizes = [8, 128], strides = [1, 1]} : vector<64x128xf32> to vector<8x128xf32>
    %126 = vector.extract_strided_slice %108 {offsets = [0, 256], sizes = [8, 128], strides = [1, 1]} : vector<8x384xf32> to vector<8x128xf32>
    %127 = arith.addf %126, %19 : vector<8x128xf32>
    %128 = arith.mulf %116, %127 : vector<8x128xf32>
    %129 = arith.addf %125, %128 : vector<8x128xf32>
    %130 = math.tanh %129 : vector<8x128xf32>
    %cst_35 = arith.constant 1.000000e+00 : f32
    %131 = vector.broadcast %cst_35 : f32 to vector<8x128xf32>
    %132 = arith.subf %131, %124 : vector<8x128xf32>
    %133 = arith.mulf %132, %130 : vector<8x128xf32>
    %134 = arith.mulf %124, %106 : vector<8x128xf32>
    %135 = arith.addf %133, %134 : vector<8x128xf32>
    %c24 = arith.constant 24 : index
    %c0_36 = arith.constant 0 : index
    %136 = vector.load %arg10[%c24, %c0_36] : memref<64x128xf32, #tpu.memory_space<vmem>>, vector<8x128xf32>
    tpu.vector_store %arg10[%c24, %c0_36], %135 {strides = array<i32>} : memref<64x128xf32, #tpu.memory_space<vmem>>, vector<8x128xf32>,
    %cst_37 = arith.constant dense<0.000000e+00> : vector<8x384xf32>
    %137 = tpu.matmul %135, %16, %cst_37 {dimension_numbers = #tpu.dot_dimension_numbers<[1], [0], [0], [1], [0, 0, 1, 1], [], []>} : vector<8x128xf32>, vector<128x384xf32>, vector<8x384xf32> -> vector<8x384xf32>
    %138 = vector.extract_strided_slice %13 {offsets = [32, 0], sizes = [8, 128], strides = [1, 1]} : vector<64x128xf32> to vector<8x128xf32>
    %139 = vector.extract_strided_slice %137 {offsets = [0, 0], sizes = [8, 128], strides = [1, 1]} : vector<8x384xf32> to vector<8x128xf32>
    %140 = arith.addf %138, %139 : vector<8x128xf32>
    %141 = arith.negf %140 : vector<8x128xf32>
    %142 = math.exp %141 : vector<8x128xf32>
    %cst_38 = arith.constant 1.000000e+00 : f32
    %143 = vector.broadcast %cst_38 : f32 to vector<8x128xf32>
    %144 = arith.addf %143, %142 : vector<8x128xf32>
    %145 = arith.divf %143, %144 : vector<8x128xf32>
    %146 = vector.extract_strided_slice %14 {offsets = [32, 0], sizes = [8, 128], strides = [1, 1]} : vector<64x128xf32> to vector<8x128xf32>
    %147 = vector.extract_strided_slice %137 {offsets = [0, 128], sizes = [8, 128], strides = [1, 1]} : vector<8x384xf32> to vector<8x128xf32>
    %148 = arith.addf %146, %147 : vector<8x128xf32>
    %149 = arith.negf %148 : vector<8x128xf32>
    %150 = math.exp %149 : vector<8x128xf32>
    %cst_39 = arith.constant 1.000000e+00 : f32
    %151 = vector.broadcast %cst_39 : f32 to vector<8x128xf32>
    %152 = arith.addf %151, %150 : vector<8x128xf32>
    %153 = arith.divf %151, %152 : vector<8x128xf32>
    %154 = vector.extract_strided_slice %15 {offsets = [32, 0], sizes = [8, 128], strides = [1, 1]} : vector<64x128xf32> to vector<8x128xf32>
    %155 = vector.extract_strided_slice %137 {offsets = [0, 256], sizes = [8, 128], strides = [1, 1]} : vector<8x384xf32> to vector<8x128xf32>
    %156 = arith.addf %155, %19 : vector<8x128xf32>
    %157 = arith.mulf %145, %156 : vector<8x128xf32>
    %158 = arith.addf %154, %157 : vector<8x128xf32>
    %159 = math.tanh %158 : vector<8x128xf32>
    %cst_40 = arith.constant 1.000000e+00 : f32
    %160 = vector.broadcast %cst_40 : f32 to vector<8x128xf32>
    %161 = arith.subf %160, %153 : vector<8x128xf32>
    %162 = arith.mulf %161, %159 : vector<8x128xf32>
    %163 = arith.mulf %153, %135 : vector<8x128xf32>
    %164 = arith.addf %162, %163 : vector<8x128xf32>
    %c32 = arith.constant 32 : index
    %c0_41 = arith.constant 0 : index
    %165 = vector.load %arg10[%c32, %c0_41] : memref<64x128xf32, #tpu.memory_space<vmem>>, vector<8x128xf32>
    tpu.vector_store %arg10[%c32, %c0_41], %164 {strides = array<i32>} : memref<64x128xf32, #tpu.memory_space<vmem>>, vector<8x128xf32>,
    %cst_42 = arith.constant dense<0.000000e+00> : vector<8x384xf32>
    %166 = tpu.matmul %164, %16, %cst_42 {dimension_numbers = #tpu.dot_dimension_numbers<[1], [0], [0], [1], [0, 0, 1, 1], [], []>} : vector<8x128xf32>, vector<128x384xf32>, vector<8x384xf32> -> vector<8x384xf32>
    %167 = vector.extract_strided_slice %13 {offsets = [40, 0], sizes = [8, 128], strides = [1, 1]} : vector<64x128xf32> to vector<8x128xf32>
    %168 = vector.extract_strided_slice %166 {offsets = [0, 0], sizes = [8, 128], strides = [1, 1]} : vector<8x384xf32> to vector<8x128xf32>
    %169 = arith.addf %167, %168 : vector<8x128xf32>
    %170 = arith.negf %169 : vector<8x128xf32>
    %171 = math.exp %170 : vector<8x128xf32>
    %cst_43 = arith.constant 1.000000e+00 : f32
    %172 = vector.broadcast %cst_43 : f32 to vector<8x128xf32>
    %173 = arith.addf %172, %171 : vector<8x128xf32>
    %174 = arith.divf %172, %173 : vector<8x128xf32>
    %175 = vector.extract_strided_slice %14 {offsets = [40, 0], sizes = [8, 128], strides = [1, 1]} : vector<64x128xf32> to vector<8x128xf32>
    %176 = vector.extract_strided_slice %166 {offsets = [0, 128], sizes = [8, 128], strides = [1, 1]} : vector<8x384xf32> to vector<8x128xf32>
    %177 = arith.addf %175, %176 : vector<8x128xf32>
    %178 = arith.negf %177 : vector<8x128xf32>
    %179 = math.exp %178 : vector<8x128xf32>
    %cst_44 = arith.constant 1.000000e+00 : f32
    %180 = vector.broadcast %cst_44 : f32 to vector<8x128xf32>
    %181 = arith.addf %180, %179 : vector<8x128xf32>
    %182 = arith.divf %180, %181 : vector<8x128xf32>
    %183 = vector.extract_strided_slice %15 {offsets = [40, 0], sizes = [8, 128], strides = [1, 1]} : vector<64x128xf32> to vector<8x128xf32>
    %184 = vector.extract_strided_slice %166 {offsets = [0, 256], sizes = [8, 128], strides = [1, 1]} : vector<8x384xf32> to vector<8x128xf32>
    %185 = arith.addf %184, %19 : vector<8x128xf32>
    %186 = arith.mulf %174, %185 : vector<8x128xf32>
    %187 = arith.addf %183, %186 : vector<8x128xf32>
    %188 = math.tanh %187 : vector<8x128xf32>
    %cst_45 = arith.constant 1.000000e+00 : f32
    %189 = vector.broadcast %cst_45 : f32 to vector<8x128xf32>
    %190 = arith.subf %189, %182 : vector<8x128xf32>
    %191 = arith.mulf %190, %188 : vector<8x128xf32>
    %192 = arith.mulf %182, %164 : vector<8x128xf32>
    %193 = arith.addf %191, %192 : vector<8x128xf32>
    %c40 = arith.constant 40 : index
    %c0_46 = arith.constant 0 : index
    %194 = vector.load %arg10[%c40, %c0_46] : memref<64x128xf32, #tpu.memory_space<vmem>>, vector<8x128xf32>
    tpu.vector_store %arg10[%c40, %c0_46], %193 {strides = array<i32>} : memref<64x128xf32, #tpu.memory_space<vmem>>, vector<8x128xf32>,
    %cst_47 = arith.constant dense<0.000000e+00> : vector<8x384xf32>
    %195 = tpu.matmul %193, %16, %cst_47 {dimension_numbers = #tpu.dot_dimension_numbers<[1], [0], [0], [1], [0, 0, 1, 1], [], []>} : vector<8x128xf32>, vector<128x384xf32>, vector<8x384xf32> -> vector<8x384xf32>
    %196 = vector.extract_strided_slice %13 {offsets = [48, 0], sizes = [8, 128], strides = [1, 1]} : vector<64x128xf32> to vector<8x128xf32>
    %197 = vector.extract_strided_slice %195 {offsets = [0, 0], sizes = [8, 128], strides = [1, 1]} : vector<8x384xf32> to vector<8x128xf32>
    %198 = arith.addf %196, %197 : vector<8x128xf32>
    %199 = arith.negf %198 : vector<8x128xf32>
    %200 = math.exp %199 : vector<8x128xf32>
    %cst_48 = arith.constant 1.000000e+00 : f32
    %201 = vector.broadcast %cst_48 : f32 to vector<8x128xf32>
    %202 = arith.addf %201, %200 : vector<8x128xf32>
    %203 = arith.divf %201, %202 : vector<8x128xf32>
    %204 = vector.extract_strided_slice %14 {offsets = [48, 0], sizes = [8, 128], strides = [1, 1]} : vector<64x128xf32> to vector<8x128xf32>
    %205 = vector.extract_strided_slice %195 {offsets = [0, 128], sizes = [8, 128], strides = [1, 1]} : vector<8x384xf32> to vector<8x128xf32>
    %206 = arith.addf %204, %205 : vector<8x128xf32>
    %207 = arith.negf %206 : vector<8x128xf32>
    %208 = math.exp %207 : vector<8x128xf32>
    %cst_49 = arith.constant 1.000000e+00 : f32
    %209 = vector.broadcast %cst_49 : f32 to vector<8x128xf32>
    %210 = arith.addf %209, %208 : vector<8x128xf32>
    %211 = arith.divf %209, %210 : vector<8x128xf32>
    %212 = vector.extract_strided_slice %15 {offsets = [48, 0], sizes = [8, 128], strides = [1, 1]} : vector<64x128xf32> to vector<8x128xf32>
    %213 = vector.extract_strided_slice %195 {offsets = [0, 256], sizes = [8, 128], strides = [1, 1]} : vector<8x384xf32> to vector<8x128xf32>
    %214 = arith.addf %213, %19 : vector<8x128xf32>
    %215 = arith.mulf %203, %214 : vector<8x128xf32>
    %216 = arith.addf %212, %215 : vector<8x128xf32>
    %217 = math.tanh %216 : vector<8x128xf32>
    %cst_50 = arith.constant 1.000000e+00 : f32
    %218 = vector.broadcast %cst_50 : f32 to vector<8x128xf32>
    %219 = arith.subf %218, %211 : vector<8x128xf32>
    %220 = arith.mulf %219, %217 : vector<8x128xf32>
    %221 = arith.mulf %211, %193 : vector<8x128xf32>
    %222 = arith.addf %220, %221 : vector<8x128xf32>
    %c48 = arith.constant 48 : index
    %c0_51 = arith.constant 0 : index
    %223 = vector.load %arg10[%c48, %c0_51] : memref<64x128xf32, #tpu.memory_space<vmem>>, vector<8x128xf32>
    tpu.vector_store %arg10[%c48, %c0_51], %222 {strides = array<i32>} : memref<64x128xf32, #tpu.memory_space<vmem>>, vector<8x128xf32>,
    %cst_52 = arith.constant dense<0.000000e+00> : vector<8x384xf32>
    %224 = tpu.matmul %222, %16, %cst_52 {dimension_numbers = #tpu.dot_dimension_numbers<[1], [0], [0], [1], [0, 0, 1, 1], [], []>} : vector<8x128xf32>, vector<128x384xf32>, vector<8x384xf32> -> vector<8x384xf32>
    %225 = vector.extract_strided_slice %13 {offsets = [56, 0], sizes = [8, 128], strides = [1, 1]} : vector<64x128xf32> to vector<8x128xf32>
    %226 = vector.extract_strided_slice %224 {offsets = [0, 0], sizes = [8, 128], strides = [1, 1]} : vector<8x384xf32> to vector<8x128xf32>
    %227 = arith.addf %225, %226 : vector<8x128xf32>
    %228 = arith.negf %227 : vector<8x128xf32>
    %229 = math.exp %228 : vector<8x128xf32>
    %cst_53 = arith.constant 1.000000e+00 : f32
    %230 = vector.broadcast %cst_53 : f32 to vector<8x128xf32>
    %231 = arith.addf %230, %229 : vector<8x128xf32>
    %232 = arith.divf %230, %231 : vector<8x128xf32>
    %233 = vector.extract_strided_slice %14 {offsets = [56, 0], sizes = [8, 128], strides = [1, 1]} : vector<64x128xf32> to vector<8x128xf32>
    %234 = vector.extract_strided_slice %224 {offsets = [0, 128], sizes = [8, 128], strides = [1, 1]} : vector<8x384xf32> to vector<8x128xf32>
    %235 = arith.addf %233, %234 : vector<8x128xf32>
    %236 = arith.negf %235 : vector<8x128xf32>
    %237 = math.exp %236 : vector<8x128xf32>
    %cst_54 = arith.constant 1.000000e+00 : f32
    %238 = vector.broadcast %cst_54 : f32 to vector<8x128xf32>
    %239 = arith.addf %238, %237 : vector<8x128xf32>
    %240 = arith.divf %238, %239 : vector<8x128xf32>
    %241 = vector.extract_strided_slice %15 {offsets = [56, 0], sizes = [8, 128], strides = [1, 1]} : vector<64x128xf32> to vector<8x128xf32>
    %242 = vector.extract_strided_slice %224 {offsets = [0, 256], sizes = [8, 128], strides = [1, 1]} : vector<8x384xf32> to vector<8x128xf32>
    %243 = arith.addf %242, %19 : vector<8x128xf32>
    %244 = arith.mulf %232, %243 : vector<8x128xf32>
    %245 = arith.addf %241, %244 : vector<8x128xf32>
    %246 = math.tanh %245 : vector<8x128xf32>
    %cst_55 = arith.constant 1.000000e+00 : f32
    %247 = vector.broadcast %cst_55 : f32 to vector<8x128xf32>
    %248 = arith.subf %247, %240 : vector<8x128xf32>
    %249 = arith.mulf %248, %246 : vector<8x128xf32>
    %250 = arith.mulf %240, %222 : vector<8x128xf32>
    %251 = arith.addf %249, %250 : vector<8x128xf32>
    %c56 = arith.constant 56 : index
    %c0_56 = arith.constant 0 : index
    %252 = vector.load %arg10[%c56, %c0_56] : memref<64x128xf32, #tpu.memory_space<vmem>>, vector<8x128xf32>
    tpu.vector_store %arg10[%c56, %c0_56], %251 {strides = array<i32>} : memref<64x128xf32, #tpu.memory_space<vmem>>, vector<8x128xf32>,
    %c0_57 = arith.constant 0 : index
    %c0_58 = arith.constant 0 : index
    %253 = vector.load %arg10[%c0_57, %c0_58] : memref<64x128xf32, #tpu.memory_space<vmem>>, vector<64x128xf32>
    %c0_59 = arith.constant 0 : index
    %c0_60 = arith.constant 0 : index
    %254 = vector.load %arg7[%c0_59, %c0_60] : memref<128x128xf32, #tpu.memory_space<vmem>>, vector<128x128xf32>
    %cst_61 = arith.constant dense<0.000000e+00> : vector<64x128xf32>
    %255 = tpu.matmul %253, %254, %cst_61 {dimension_numbers = #tpu.dot_dimension_numbers<[1], [0], [0], [1], [0, 0, 1, 1], [], []>} : vector<64x128xf32>, vector<128x128xf32>, vector<64x128xf32> -> vector<64x128xf32>
    %c0_62 = arith.constant 0 : index
    %c0_63 = arith.constant 0 : index
    %256 = vector.load %arg8[%c0_62, %c0_63] : memref<1x128xf32, #tpu.memory_space<vmem>>, vector<1x128xf32>
    %257 = vector.broadcast %256 : vector<1x128xf32> to vector<64x128xf32>
    %258 = arith.addf %255, %257 : vector<64x128xf32>
    %c0_64 = arith.constant 0 : index
    %c0_65 = arith.constant 0 : index
    %259 = vector.load %arg9[%c0_64, %c0_65] : memref<64x128xf32, #tpu.memory_space<vmem>>, vector<64x128xf32>
    tpu.vector_store %arg9[%c0_64, %c0_65], %258 {strides = array<i32>} : memref<64x128xf32, #tpu.memory_space<vmem>>, vector<64x128xf32>,
    return
  }
}

</mosaic_0001>

<llo_original>
// kernel: tpu_custom_call.1
$region0: #{tpu_custom_call.1}
  #allocation0 [shape = 'u32[]', space=smem, size = 0x4, offset = 0x4, fixed_abs, tag = 'smem constant byte address 0x4 - core index']
  #allocation1 [shape = 'u32[72,128]{1,0:T(1,128)}', space=vmem, size = 0x9000, scoped, tag = 'internal scratch']
  #allocation2 [shape = 'f32[64,128]{1,0:T(8,128)}', space=vmem, size = 0x8000, scoped, tag = 'scratch operand']
  %s0 = inlined_call_operand.vmem [shape: f32[64,32], index: 0, kind: input, shape index: {}]
  %s1 = inlined_call_operand.hbm [shape: f32[32,32], index: 1, kind: input, shape index: {}]
  %s2 = inlined_call_operand.hbm [shape: f32[1,32], index: 2, kind: input, shape index: {}]
  %s3 = inlined_call_operand.vmem [shape: f32[32,384], index: 3, kind: input, shape index: {}]
  %s4 = inlined_call_operand.vmem [shape: f32[1,384], index: 4, kind: input, shape index: {}]
  %s5 = inlined_call_operand.hbm [shape: f32[128,384], index: 5, kind: input, shape index: {}]
  %s6 = inlined_call_operand.vmem [shape: f32[1,128], index: 6, kind: input, shape index: {}]
  %s7 = inlined_call_operand.hbm [shape: f32[128,128], index: 7, kind: input, shape index: {}]
  %s8 = inlined_call_operand.vmem [shape: f32[1,128], index: 8, kind: input, shape index: {}]
  %s9 = inlined_call_operand.hbm [shape: f32[64,128], index: 9, kind: output, shape index: {}]
  %s10 = sld [smem:[#allocation0]]
  $region62: #{tpu_custom_call.1} parent=0
    _
  %s12 = ssub.s32 1, %s10
  %s13 = scalar_select 0, %s12, %s10
  $region1: #{tpu_custom_call.1} parent=0
    #allocation3 [shape = 'u8[16384]{0}', space=vmem, size = 0x4000, scoped, tag = 'input window, operand 1, single buffered']
    #allocation4 [shape = 's32[1]{0}', space=sflag, size = 0x4, scoped, tag = 'scoped memory for tpu_custom_call.1']
    #allocation5 [shape = 's32[1]{0}', space=sflag, size = 0x4, scoped, tag = 'scoped memory for tpu_custom_call.1']
    #allocation6 [shape = 'u8[512]{0}', space=vmem, size = 0x400, scoped, tag = 'input window, operand 2, single buffered']
    #allocation7 [shape = 's32[1]{0}', space=sflag, size = 0x4, scoped, tag = 'scoped memory for tpu_custom_call.1']
    #allocation8 [shape = 'u8[196608]{0}', space=vmem, size = 0x30000, scoped, tag = 'input window, operand 5, single buffered']
    #allocation9 [shape = 'u8[65536]{0}', space=vmem, size = 0x10000, scoped, tag = 'input window, operand 7, single buffered']
    #allocation10 [shape = 's32[1]{0}', space=sflag, size = 0x4, scoped, tag = 'scoped memory for tpu_custom_call.1']
    #allocation11 [shape = 'u8[32768]{0}', space=vmem, size = 0x8000, scoped, tag = 'output window, operand 0, single buffered']
    %14 = vsyncpa [#allocation4], 0
    %15 = vsyncpa [#allocation7], 0
    %16 = vsyncpa [#allocation10], 0
    %17 = vsyncpa [#allocation5], 0
    // Predicated region
    $region2: #{tpu_custom_call.1} parent=1 // pred_check
      _
    $region3: #{tpu_custom_call.1} parent=1 // pred_check_branch
      %19 = sbr.rel (0) target = $region5
    $region4: #{tpu_custom_call.1} parent=1 // pred_region
      _
    $region5: #{tpu_custom_call.1} parent=1 // pred_fallthru
      _
    // Predicated region
    $region6: #{tpu_custom_call.1} parent=1 // pred_check
      _
    $region7: #{tpu_custom_call.1} parent=1 // pred_check_branch
      %21 = sbr.rel (0) target = $region9
    $region8: #{tpu_custom_call.1} parent=1 // pred_region
      %23 = vsyncadd [#allocation4], 0
      %s24 = sshll.u32 %s1, 4
      %s25 = int_to_ptr.hbm [resolvable:$true] %s24
      %s26 = sshll.u32 [#allocation3], 4
      %s27 = int_to_ptr.vmem [resolvable:$true] %s26
      %32 = dma.hbm_to_vmem [thread:$0]  %s25, 512, %s27, [#allocation4], 128, 128, 8
    $region9: #{tpu_custom_call.1} parent=1 // pred_fallthru
      _
    // Predicated region
    $region10: #{tpu_custom_call.1} parent=1 // pred_check
      _
    $region11: #{tpu_custom_call.1} parent=1 // pred_check_branch
      %34 = sbr.rel (0) target = $region13
    $region12: #{tpu_custom_call.1} parent=1 // pred_region
      %36 = vsyncadd [#allocation7], 0
      %s38 = sshll.u32 %s2, 4
      %s39 = int_to_ptr.hbm [resolvable:$true] %s38
      %s40 = sshll.u32 [#allocation6], 4
      %s41 = int_to_ptr.vmem [resolvable:$true] %s40
      %43 = dma.hbm_to_vmem [thread:$0]  %s39, 16, %s41, [#allocation7]
    $region13: #{tpu_custom_call.1} parent=1 // pred_fallthru
      _
    // Predicated region
    $region14: #{tpu_custom_call.1} parent=1 // pred_check
      _
    $region15: #{tpu_custom_call.1} parent=1 // pred_check_branch
      %45 = sbr.rel (0) target = $region17
    $region16: #{tpu_custom_call.1} parent=1 // pred_region
      _
    $region17: #{tpu_custom_call.1} parent=1 // pred_fallthru
      _
    // Predicated region
    $region18: #{tpu_custom_call.1} parent=1 // pred_check
      _
    $region19: #{tpu_custom_call.1} parent=1 // pred_check_branch
      %47 = sbr.rel (0) target = $region21
    $region20: #{tpu_custom_call.1} parent=1 // pred_region
      _
    $region21: #{tpu_custom_call.1} parent=1 // pred_fallthru
      _
    // Predicated region
    $region22: #{tpu_custom_call.1} parent=1 // pred_check
      _
    $region23: #{tpu_custom_call.1} parent=1 // pred_check_branch
      %49 = sbr.rel (0) target = $region25
    $region24: #{tpu_custom_call.1} parent=1 // pred_region
      %51 = vsyncadd [#allocation7], 0
      %s52 = sshll.u32 %s5, 4
      %s53 = int_to_ptr.hbm [resolvable:$true] %s52
      %s54 = sshll.u32 [#allocation8], 4
      %s55 = int_to_ptr.vmem [resolvable:$true] %s54
      %60 = dma.hbm_to_vmem [thread:$0]  %s53, 6144, %s55, [#allocation7], 384, 384, 24
    $region25: #{tpu_custom_call.1} parent=1 // pred_fallthru
      _
    // Predicated region
    $region26: #{tpu_custom_call.1} parent=1 // pred_check
      _
    $region27: #{tpu_custom_call.1} parent=1 // pred_check_branch
      %62 = sbr.rel (0) target = $region29
    $region28: #{tpu_custom_call.1} parent=1 // pred_region
      _
    $region29: #{tpu_custom_call.1} parent=1 // pred_fallthru
      _
    // Predicated region
    $region30: #{tpu_custom_call.1} parent=1 // pred_check
      _
    $region31: #{tpu_custom_call.1} parent=1 // pred_check_branch
      %64 = sbr.rel (0) target = $region33
    $region32: #{tpu_custom_call.1} parent=1 // pred_region
      %66 = vsyncadd [#allocation10], 0
      %s67 = sshll.u32 %s7, 4
      %s68 = int_to_ptr.hbm [resolvable:$true] %s67
      %s69 = sshll.u32 [#allocation9], 4
      %s70 = int_to_ptr.vmem [resolvable:$true] %s69
      %75 = dma.hbm_to_vmem [thread:$0]  %s68, 2048, %s70, [#allocation10], 128, 128, 8
    $region33: #{tpu_custom_call.1} parent=1 // pred_fallthru
      _
    // Predicated region
    $region34: #{tpu_custom_call.1} parent=1 // pred_check
      _
    $region35: #{tpu_custom_call.1} parent=1 // pred_check_branch
      %77 = sbr.rel (0) target = $region37
    $region36: #{tpu_custom_call.1} parent=1 // pred_region
      _
    $region37: #{tpu_custom_call.1} parent=1 // pred_fallthru
      _
    // Predicated region
    $region38: #{tpu_custom_call.1} parent=1 // pred_check
      _
    $region39: #{tpu_custom_call.1} parent=1 // pred_check_branch
      %79 = sbr.rel (0) target = $region41
    $region40: #{tpu_custom_call.1} parent=1 // pred_region
      %81 = dma.done [#allocation4], 512
    $region41: #{tpu_custom_call.1} parent=1 // pred_fallthru
      _
    // Predicated region
    $region42: #{tpu_custom_call.1} parent=1 // pred_check
      _
    $region43: #{tpu_custom_call.1} parent=1 // pred_check_branch
      %83 = sbr.rel (0) target = $region45
    $region44: #{tpu_custom_call.1} parent=1 // pred_region
      %85 = dma.done [#allocation7], 16
    $region45: #{tpu_custom_call.1} parent=1 // pred_fallthru
      _
    // Predicated region
    $region46: #{tpu_custom_call.1} parent=1 // pred_check
      _
    $region47: #{tpu_custom_call.1} parent=1 // pred_check_branch
      %87 = sbr.rel (0) target = $region49
    $region48: #{tpu_custom_call.1} parent=1 // pred_region
      %89 = dma.done [#allocation7], 6144
    $region49: #{tpu_custom_call.1} parent=1 // pred_fallthru
      _
    // Predicated region
    $region50: #{tpu_custom_call.1} parent=1 // pred_check
      _
    $region51: #{tpu_custom_call.1} parent=1 // pred_check_branch
      %91 = sbr.rel (0) target = $region53
    $region52: #{tpu_custom_call.1} parent=1 // pred_region
      %93 = dma.done [#allocation10], 2048
    $region53: #{tpu_custom_call.1} parent=1 // pred_fallthru
      _
    %v94 = vld [vmem:[%s0] sm:$0xff]
    %v95 = vld [vmem:[%s0 + $0x8] sm:$0xff]
    %v96 = vld [vmem:[%s0 + $0x10] sm:$0xff]
    %v97 = vld [vmem:[%s0 + $0x18] sm:$0xff]
    %v98 = vld [vmem:[%s0 + $0x20] sm:$0xff]
    %v99 = vld [vmem:[%s0 + $0x28] sm:$0xff]
    %v100 = vld [vmem:[%s0 + $0x30] sm:$0xff]
    %v101 = vld [vmem:[%s0 + $0x38] sm:$0xff]
    %v102 = vld [vmem:[#allocation3] sm:$0xff]
    %v103 = vld [vmem:[#allocation3 + $0x8] sm:$0xff]
    %v104 = vld [vmem:[#allocation3 + $0x10] sm:$0xff]
    %v105 = vld [vmem:[#allocation3 + $0x18] sm:$0xff]
    %v106 = vld [vmem:[#allocation6] sm:$0x1]
    %v108 = vperm.slane %v106, 0
    %vm110 = vcmask 261120
    %v112 = vsel %vm110, %v94, 0
    %v115 = vsel %vm110, %v95, 0
    %v118 = vsel %vm110, %v96, 0
    %v121 = vsel %vm110, %v97, 0
    %v124 = vsel %vm110, %v98, 0
    %v127 = vsel %vm110, %v99, 0
    %v130 = vsel %vm110, %v100, 0
    %v133 = vsel %vm110, %v101, 0
    %135 = vmatpush.msra.mxu0 0.0
    %136 = vmatpush.msra.mxu0 0.0
    %137 = vmatpush.msra.mxu0 0.0
    %138 = vmatpush.msra.mxu0 0.0
    %139 = vmatpush.msra.mxu0 0.0
    %140 = vmatpush.msra.mxu0 0.0
    %141 = vmatpush.msra.mxu0 0.0
    %142 = vmatpush.msra.mxu0 0.0
    %143 = vmatpush.msra.mxu0 0.0
    %144 = vmatpush.msra.mxu0 0.0
    %145 = vmatpush.msra.mxu0 0.0
    %146 = vmatpush.msra.mxu0 0.0
    %147 = vmatpush.msra.mxu0 %v105
    %148 = vmatpush.msra.mxu0 %v104
    %149 = vmatpush.msra.mxu0 %v103
    %150 = vmatpush.msra.mxu0 %v102
    %151 = vmatmul.f32.gmra.mxu0 %v112
    %v152 = vpop.f32.mrf.mxu0
    %v153 = vadd.f32 %v108, %v152
    %154 = vmatmul.f32.gmra.mxu0 %v115
    %v155 = vpop.f32.mrf.mxu0
    %v156 = vadd.f32 %v108, %v155
    %157 = vmatmul.f32.gmra.mxu0 %v118
    %v158 = vpop.f32.mrf.mxu0
    %v159 = vadd.f32 %v108, %v158
    %160 = vmatmul.f32.gmra.mxu0 %v121
    %v161 = vpop.f32.mrf.mxu0
    %v162 = vadd.f32 %v108, %v161
    %163 = vmatmul.f32.gmra.mxu0 %v124
    %v164 = vpop.f32.mrf.mxu0
    %v165 = vadd.f32 %v108, %v164
    %166 = vmatmul.f32.gmra.mxu0 %v127
    %v167 = vpop.f32.mrf.mxu0
    %v168 = vadd.f32 %v108, %v167
    %169 = vmatmul.f32.gmra.mxu0 %v130
    %v170 = vpop.f32.mrf.mxu0
    %v171 = vadd.f32 %v108, %v170
    %172 = vmatmul.f32.gmra.mxu0 %v133
    %v173 = vpop.f32.mrf.mxu0
    %v174 = vadd.f32 %v108, %v173
    %175 = vdwg.mxu0
    %v176 = vmax.f32 %v153, 0.0
    %v177 = vmax.f32 %v156, 0.0
    %v178 = vmax.f32 %v159, 0.0
    %v179 = vmax.f32 %v162, 0.0
    %v180 = vmax.f32 %v165, 0.0
    %v181 = vmax.f32 %v168, 0.0
    %v182 = vmax.f32 %v171, 0.0
    %v183 = vmax.f32 %v174, 0.0
    %v184 = vld [vmem:[%s3] sm:$0xff]
    %v185 = vld [vmem:[%s3 + $0x8] sm:$0xff]
    %v186 = vld [vmem:[%s3 + $0x10] sm:$0xff]
    %v187 = vld [vmem:[%s3 + $0x18] sm:$0xff]
    %v188 = vld [vmem:[%s3 + $0x20] sm:$0xff]
    %v189 = vld [vmem:[%s3 + $0x28] sm:$0xff]
    %v190 = vld [vmem:[%s3 + $0x30] sm:$0xff]
    %v191 = vld [vmem:[%s3 + $0x38] sm:$0xff]
    %v192 = vld [vmem:[%s3 + $0x40] sm:$0xff]
    %v193 = vld [vmem:[%s3 + $0x48] sm:$0xff]
    %v194 = vld [vmem:[%s3 + $0x50] sm:$0xff]
    %v195 = vld [vmem:[%s3 + $0x58] sm:$0xff]
    %v196 = vld [vmem:[%s4] sm:$0x7]
    %v198 = vperm.slane %v196, 0
    %v199 = vperm.slane %v196, 1
    %v200 = vperm.slane %v196, 2
    %v205 = vsel %vm110, %v176, 0
    %v208 = vsel %vm110, %v177, 0
    %v211 = vsel %vm110, %v178, 0
    %v214 = vsel %vm110, %v179, 0
    %v217 = vsel %vm110, %v180, 0
    %v220 = vsel %vm110, %v181, 0
    %v223 = vsel %vm110, %v182, 0
    %v226 = vsel %vm110, %v183, 0
    %228 = vmatpush.msra.mxu0 0.0
    %229 = vmatpush.msra.mxu0 0.0
    %230 = vmatpush.msra.mxu0 0.0
    %231 = vmatpush.msra.mxu0 0.0
    %232 = vmatpush.msra.mxu0 0.0
    %233 = vmatpush.msra.mxu0 0.0
    %234 = vmatpush.msra.mxu0 0.0
    %235 = vmatpush.msra.mxu0 0.0
    %236 = vmatpush.msra.mxu0 0.0
    %237 = vmatpush.msra.mxu0 0.0
    %238 = vmatpush.msra.mxu0 0.0
    %239 = vmatpush.msra.mxu0 0.0
    %240 = vmatpush.msra.mxu0 %v193
    %241 = vmatpush.msra.mxu0 %v190
    %242 = vmatpush.msra.mxu0 %v187
    %243 = vmatpush.msra.mxu0 %v184
    %244 = vmatmul.f32.gmra.mxu0 %v205
    %v245 = vpop.f32.mrf.mxu0
    %v246 = vadd.f32 %v198, %v245
    %247 = vmatmul.f32.gmra.mxu0 %v208
    %v248 = vpop.f32.mrf.mxu0
    %v249 = vadd.f32 %v198, %v248
    %250 = vmatmul.f32.gmra.mxu0 %v211
    %v251 = vpop.f32.mrf.mxu0
    %v252 = vadd.f32 %v198, %v251
    %253 = vmatmul.f32.gmra.mxu0 %v214
    %v254 = vpop.f32.mrf.mxu0
    %v255 = vadd.f32 %v198, %v254
    %256 = vmatmul.f32.gmra.mxu0 %v217
    %v257 = vpop.f32.mrf.mxu0
    %v258 = vadd.f32 %v198, %v257
    %259 = vmatmul.f32.gmra.mxu0 %v220
    %v260 = vpop.f32.mrf.mxu0
    %v261 = vadd.f32 %v198, %v260
    %262 = vmatmul.f32.gmra.mxu0 %v223
    %v263 = vpop.f32.mrf.mxu0
    %v264 = vadd.f32 %v198, %v263
    %265 = vmatmul.f32.gmra.mxu0 %v226
    %v266 = vpop.f32.mrf.mxu0
    %v267 = vadd.f32 %v198, %v266
    %268 = vdwg.mxu0
    %269 = vmatpush.msra.mxu0 0.0
    %270 = vmatpush.msra.mxu0 0.0
    %271 = vmatpush.msra.mxu0 0.0
    %272 = vmatpush.msra.mxu0 0.0
    %273 = vmatpush.msra.mxu0 0.0
    %274 = vmatpush.msra.mxu0 0.0
    %275 = vmatpush.msra.mxu0 0.0
    %276 = vmatpush.msra.mxu0 0.0
    %277 = vmatpush.msra.mxu0 0.0
    %278 = vmatpush.msra.mxu0 0.0
    %279 = vmatpush.msra.mxu0 0.0
    %280 = vmatpush.msra.mxu0 0.0
    %281 = vmatpush.msra.mxu0 %v194
    %282 = vmatpush.msra.mxu0 %v191
    %283 = vmatpush.msra.mxu0 %v188
    %284 = vmatpush.msra.mxu0 %v185
    %285 = vmatmul.f32.gmra.mxu0 %v205
    %v286 = vpop.f32.mrf.mxu0
    %v287 = vadd.f32 %v199, %v286
    %288 = vmatmul.f32.gmra.mxu0 %v208
    %v289 = vpop.f32.mrf.mxu0
    %v290 = vadd.f32 %v199, %v289
    %291 = vmatmul.f32.gmra.mxu0 %v211
    %v292 = vpop.f32.mrf.mxu0
    %v293 = vadd.f32 %v199, %v292
    %294 = vmatmul.f32.gmra.mxu0 %v214
    %v295 = vpop.f32.mrf.mxu0
    %v296 = vadd.f32 %v199, %v295
    %297 = vmatmul.f32.gmra.mxu0 %v217
    %v298 = vpop.f32.mrf.mxu0
    %v299 = vadd.f32 %v199, %v298
    %300 = vmatmul.f32.gmra.mxu0 %v220
    %v301 = vpop.f32.mrf.mxu0
    %v302 = vadd.f32 %v199, %v301
    %303 = vmatmul.f32.gmra.mxu0 %v223
    %v304 = vpop.f32.mrf.mxu0
    %v305 = vadd.f32 %v199, %v304
    %306 = vmatmul.f32.gmra.mxu0 %v226
    %v307 = vpop.f32.mrf.mxu0
    %v308 = vadd.f32 %v199, %v307
    %309 = vdwg.mxu0
    %310 = vmatpush.msra.mxu0 0.0
    %311 = vmatpush.msra.mxu0 0.0
    %312 = vmatpush.msra.mxu0 0.0
    %313 = vmatpush.msra.mxu0 0.0
    %314 = vmatpush.msra.mxu0 0.0
    %315 = vmatpush.msra.mxu0 0.0
    %316 = vmatpush.msra.mxu0 0.0
    %317 = vmatpush.msra.mxu0 0.0
    %318 = vmatpush.msra.mxu0 0.0
    %319 = vmatpush.msra.mxu0 0.0
    %320 = vmatpush.msra.mxu0 0.0
    %321 = vmatpush.msra.mxu0 0.0
    %322 = vmatpush.msra.mxu0 %v195
    %323 = vmatpush.msra.mxu0 %v192
    %324 = vmatpush.msra.mxu0 %v189
    %325 = vmatpush.msra.mxu0 %v186
    %326 = vmatmul.f32.gmra.mxu0 %v205
    %v327 = vpop.f32.mrf.mxu0
    %v328 = vadd.f32 %v200, %v327
    %329 = vmatmul.f32.gmra.mxu0 %v208
    %v330 = vpop.f32.mrf.mxu0
    %v331 = vadd.f32 %v200, %v330
    %332 = vmatmul.f32.gmra.mxu0 %v211
    %v333 = vpop.f32.mrf.mxu0
    %v334 = vadd.f32 %v200, %v333
    %335 = vmatmul.f32.gmra.mxu0 %v214
    %v336 = vpop.f32.mrf.mxu0
    %v337 = vadd.f32 %v200, %v336
    %338 = vmatmul.f32.gmra.mxu0 %v217
    %v339 = vpop.f32.mrf.mxu0
    %v340 = vadd.f32 %v200, %v339
    %341 = vmatmul.f32.gmra.mxu0 %v220
    %v342 = vpop.f32.mrf.mxu0
    %v343 = vadd.f32 %v200, %v342
    %344 = vmatmul.f32.gmra.mxu0 %v223
    %v345 = vpop.f32.mrf.mxu0
    %v346 = vadd.f32 %v200, %v345
    %347 = vmatmul.f32.gmra.mxu0 %v226
    %v348 = vpop.f32.mrf.mxu0
    %v349 = vadd.f32 %v200, %v348
    %350 = vdwg.mxu0
    %v351 = vld [vmem:[#allocation8] sm:$0xff]
    %v352 = vld [vmem:[#allocation8 + $0x8] sm:$0xff]
    %v353 = vld [vmem:[#allocation8 + $0x10] sm:$0xff]
    %v354 = vld [vmem:[#allocation8 + $0x18] sm:$0xff]
    %v355 = vld [vmem:[#allocation8 + $0x20] sm:$0xff]
    %v356 = vld [vmem:[#allocation8 + $0x28] sm:$0xff]
    %v357 = vld [vmem:[#allocation8 + $0x30] sm:$0xff]
    %v358 = vld [vmem:[#allocation8 + $0x38] sm:$0xff]
    %v359 = vld [vmem:[#allocation8 + $0x40] sm:$0xff]
    %v360 = vld [vmem:[#allocation8 + $0x48] sm:$0xff]
    %v361 = vld [vmem:[#allocation8 + $0x50] sm:$0xff]
    %v362 = vld [vmem:[#allocation8 + $0x58] sm:$0xff]
    %v363 = vld [vmem:[#allocation8 + $0x60] sm:$0xff]
    %v364 = vld [vmem:[#allocation8 + $0x68] sm:$0xff]
    %v365 = vld [vmem:[#allocation8 + $0x70] sm:$0xff]
    %v366 = vld [vmem:[#allocation8 + $0x78] sm:$0xff]
    %v367 = vld [vmem:[#allocation8 + $0x80] sm:$0xff]
    %v368 = vld [vmem:[#allocation8 + $0x88] sm:$0xff]
    %v369 = vld [vmem:[#allocation8 + $0x90] sm:$0xff]
    %v370 = vld [vmem:[#allocation8 + $0x98] sm:$0xff]
    %v371 = vld [vmem:[#allocation8 + $0xa0] sm:$0xff]
    %v372 = vld [vmem:[#allocation8 + $0xa8] sm:$0xff]
    %v373 = vld [vmem:[#allocation8 + $0xb0] sm:$0xff]
    %v374 = vld [vmem:[#allocation8 + $0xb8] sm:$0xff]
    %v375 = vld [vmem:[#allocation8 + $0xc0] sm:$0xff]
    %v376 = vld [vmem:[#allocation8 + $0xc8] sm:$0xff]
    %v377 = vld [vmem:[#allocation8 + $0xd0] sm:$0xff]
    %v378 = vld [vmem:[#allocation8 + $0xd8] sm:$0xff]
    %v379 = vld [vmem:[#allocation8 + $0xe0] sm:$0xff]
    %v380 = vld [vmem:[#allocation8 + $0xe8] sm:$0xff]
    %v381 = vld [vmem:[#allocation8 + $0xf0] sm:$0xff]
    %v382 = vld [vmem:[#allocation8 + $0xf8] sm:$0xff]
    %v383 = vld [vmem:[#allocation8 + $0x100] sm:$0xff]
    %v384 = vld [vmem:[#allocation8 + $0x108] sm:$0xff]
    %v385 = vld [vmem:[#allocation8 + $0x110] sm:$0xff]
    %v386 = vld [vmem:[#allocation8 + $0x118] sm:$0xff]
    %v387 = vld [vmem:[#allocation8 + $0x120] sm:$0xff]
    %v388 = vld [vmem:[#allocation8 + $0x128] sm:$0xff]
    %v389 = vld [vmem:[#allocation8 + $0x130] sm:$0xff]
    %v390 = vld [vmem:[#allocation8 + $0x138] sm:$0xff]
    %v391 = vld [vmem:[#allocation8 + $0x140] sm:$0xff]
    %v392 = vld [vmem:[#allocation8 + $0x148] sm:$0xff]
    %v393 = vld [vmem:[#allocation8 + $0x150] sm:$0xff]
    %v394 = vld [vmem:[#allocation8 + $0x158] sm:$0xff]
    %v395 = vld [vmem:[#allocation8 + $0x160] sm:$0xff]
    %v396 = vld [vmem:[#allocation8 + $0x168] sm:$0xff]
    %v397 = vld [vmem:[#allocation8 + $0x170] sm:$0xff]
    %v398 = vld [vmem:[#allocation8 + $0x178] sm:$0xff]
    %v399 = vld [vmem:[%s6] sm:$0x1]
    %v401 = vperm.slane %v399, 0
    %403 = vmatpush.msra.mxu0 %v396
    %404 = vmatpush.msra.mxu0 %v393
    %405 = vmatpush.msra.mxu0 %v390
    %406 = vmatpush.msra.mxu0 %v387
    %407 = vmatpush.msra.mxu0 %v384
    %408 = vmatpush.msra.mxu0 %v381
    %409 = vmatpush.msra.mxu0 %v378
    %410 = vmatpush.msra.mxu0 %v375
    %411 = vmatpush.msra.mxu0 %v372
    %412 = vmatpush.msra.mxu0 %v369
    %413 = vmatpush.msra.mxu0 %v366
    %414 = vmatpush.msra.mxu0 %v363
    %415 = vmatpush.msra.mxu0 %v360
    %416 = vmatpush.msra.mxu0 %v357
    %417 = vmatpush.msra.mxu0 %v354
    %418 = vmatpush.msra.mxu0 %v351
    %419 = vmatmul.f32.gmra.mxu0 0.0
    %v420 = vpop.f32.mrf.mxu0
    %v421 = vadd.f32 0.0, %v420
    %422 = vdwg.mxu0
    %423 = vmatpush.msra.mxu0 %v397
    %424 = vmatpush.msra.mxu0 %v394
    %425 = vmatpush.msra.mxu0 %v391
    %426 = vmatpush.msra.mxu0 %v388
    %427 = vmatpush.msra.mxu0 %v385
    %428 = vmatpush.msra.mxu0 %v382
    %429 = vmatpush.msra.mxu0 %v379
    %430 = vmatpush.msra.mxu0 %v376
    %431 = vmatpush.msra.mxu0 %v373
    %432 = vmatpush.msra.mxu0 %v370
    %433 = vmatpush.msra.mxu0 %v367
    %434 = vmatpush.msra.mxu0 %v364
    %435 = vmatpush.msra.mxu0 %v361
    %436 = vmatpush.msra.mxu0 %v358
    %437 = vmatpush.msra.mxu0 %v355
    %438 = vmatpush.msra.mxu0 %v352
    %439 = vmatmul.f32.gmra.mxu0 0.0
    %v440 = vpop.f32.mrf.mxu0
    %v441 = vadd.f32 0.0, %v440
    %442 = vdwg.mxu0
    %443 = vmatpush.msra.mxu0 %v398
    %444 = vmatpush.msra.mxu0 %v395
    %445 = vmatpush.msra.mxu0 %v392
    %446 = vmatpush.msra.mxu0 %v389
    %447 = vmatpush.msra.mxu0 %v386
    %448 = vmatpush.msra.mxu0 %v383
    %449 = vmatpush.msra.mxu0 %v380
    %450 = vmatpush.msra.mxu0 %v377
    %451 = vmatpush.msra.mxu0 %v374
    %452 = vmatpush.msra.mxu0 %v371
    %453 = vmatpush.msra.mxu0 %v368
    %454 = vmatpush.msra.mxu0 %v365
    %455 = vmatpush.msra.mxu0 %v362
    %456 = vmatpush.msra.mxu0 %v359
    %457 = vmatpush.msra.mxu0 %v356
    %458 = vmatpush.msra.mxu0 %v353
    %459 = vmatmul.f32.gmra.mxu0 0.0
    %v460 = vpop.f32.mrf.mxu0
    %v461 = vadd.f32 0.0, %v460
    %462 = vdwg.mxu0
    %v463 = vadd.f32 %v246, %v421
    %v464 = vxor.u32 %v463, 2147483648
    %v465 = vmul.f32 %v464, 1.442695
    %v466 = vpow.pop %v465
    %v467 = vadd.f32 %v466, 1.0
    %v468 = vrcp.pop %v467
    %v469 = vmul.f32 %v467, %v468
    %v470 = vsub.f32 1.0, %v469
    %v471 = vmul.f32 %v468, %v470
    %v472 = vadd.f32 %v468, %v471
    %vm473 = vweird.f32 %v467
    %vm474 = vweird.f32 %v468
    %vm475 = vmor %vm473, %vm474
    %v476 = vsel %vm475, %v468, %v472
    %v477 = vand.u32 2147483647, %v467
    %vm478 = vcmp.eq.f32.partialorder %v477, 8.507059e+37
    %v479 = vand.u32 %v467, 2147483648
    %v480 = vor.u32 1.1754944e-38, %v479
    %v481 = vsel %vm478, %v480, %v476
    %v482 = vmul.f32 1.0, %v481
    %v483 = vadd.f32 %v287, %v441
    %v484 = vxor.u32 %v483, 2147483648
    %v485 = vmul.f32 %v484, 1.442695
    %v486 = vpow.pop %v485
    %v487 = vadd.f32 %v486, 1.0
    %v488 = vrcp.pop %v487
    %v489 = vmul.f32 %v487, %v488
    %v490 = vsub.f32 1.0, %v489
    %v491 = vmul.f32 %v488, %v490
    %v492 = vadd.f32 %v488, %v491
    %vm493 = vweird.f32 %v487
    %vm494 = vweird.f32 %v488
    %vm495 = vmor %vm493, %vm494
    %v496 = vsel %vm495, %v488, %v492
    %v497 = vand.u32 2147483647, %v487
    %vm498 = vcmp.eq.f32.partialorder %v497, 8.507059e+37
    %v499 = vand.u32 %v487, 2147483648
    %v500 = vor.u32 1.1754944e-38, %v499
    %v501 = vsel %vm498, %v500, %v496
    %v502 = vmul.f32 1.0, %v501
    %v503 = vadd.f32 %v461, %v401
    %v504 = vmul.f32 %v482, %v503
    %v505 = vadd.f32 %v328, %v504
    %v506 = vtanh.pop %v505
    %v507 = vsub.f32 1.0, %v502
    %v508 = vmul.f32 %v507, %v506
    %v509 = vmul.f32 %v502, 0.0
    %v510 = vadd.f32 %v508, %v509
    %511 = vst [vmem:[#allocation2] sm:$0xff] %v510
    %512 = vmatpush.msra.mxu0 %v396
    %513 = vmatpush.msra.mxu0 %v393
    %514 = vmatpush.msra.mxu0 %v390
    %515 = vmatpush.msra.mxu0 %v387
    %516 = vmatpush.msra.mxu0 %v384
    %517 = vmatpush.msra.mxu0 %v381
    %518 = vmatpush.msra.mxu0 %v378
    %519 = vmatpush.msra.mxu0 %v375
    %520 = vmatpush.msra.mxu0 %v372
    %521 = vmatpush.msra.mxu0 %v369
    %522 = vmatpush.msra.mxu0 %v366
    %523 = vmatpush.msra.mxu0 %v363
    %524 = vmatpush.msra.mxu0 %v360
    %525 = vmatpush.msra.mxu0 %v357
    %526 = vmatpush.msra.mxu0 %v354
    %527 = vmatpush.msra.mxu0 %v351
    %528 = vmatmul.f32.gmra.mxu0 %v510
    %v529 = vpop.f32.mrf.mxu0
    %v530 = vadd.f32 0.0, %v529
    %531 = vdwg.mxu0
    %532 = vmatpush.msra.mxu0 %v397
    %533 = vmatpush.msra.mxu0 %v394
    %534 = vmatpush.msra.mxu0 %v391
    %535 = vmatpush.msra.mxu0 %v388
    %536 = vmatpush.msra.mxu0 %v385
    %537 = vmatpush.msra.mxu0 %v382
    %538 = vmatpush.msra.mxu0 %v379
    %539 = vmatpush.msra.mxu0 %v376
    %540 = vmatpush.msra.mxu0 %v373
    %541 = vmatpush.msra.mxu0 %v370
    %542 = vmatpush.msra.mxu0 %v367
    %543 = vmatpush.msra.mxu0 %v364
    %544 = vmatpush.msra.mxu0 %v361
    %545 = vmatpush.msra.mxu0 %v358
    %546 = vmatpush.msra.mxu0 %v355
    %547 = vmatpush.msra.mxu0 %v352
    %548 = vmatmul.f32.gmra.mxu0 %v510
    %v549 = vpop.f32.mrf.mxu0
    %v550 = vadd.f32 0.0, %v549
    %551 = vdwg.mxu0
    %552 = vmatpush.msra.mxu0 %v398
    %553 = vmatpush.msra.mxu0 %v395
    %554 = vmatpush.msra.mxu0 %v392
    %555 = vmatpush.msra.mxu0 %v389
    %556 = vmatpush.msra.mxu0 %v386
    %557 = vmatpush.msra.mxu0 %v383
    %558 = vmatpush.msra.mxu0 %v380
    %559 = vmatpush.msra.mxu0 %v377
    %560 = vmatpush.msra.mxu0 %v374
    %561 = vmatpush.msra.mxu0 %v371
    %562 = vmatpush.msra.mxu0 %v368
    %563 = vmatpush.msra.mxu0 %v365
    %564 = vmatpush.msra.mxu0 %v362
    %565 = vmatpush.msra.mxu0 %v359
    %566 = vmatpush.msra.mxu0 %v356
    %567 = vmatpush.msra.mxu0 %v353
    %568 = vmatmul.f32.gmra.mxu0 %v510
    %v569 = vpop.f32.mrf.mxu0
    %v570 = vadd.f32 0.0, %v569
    %571 = vdwg.mxu0
    %v572 = vadd.f32 %v249, %v530
    %v573 = vxor.u32 %v572, 2147483648
    %v574 = vmul.f32 %v573, 1.442695
    %v575 = vpow.pop %v574
    %v576 = vadd.f32 %v575, 1.0
    %v577 = vrcp.pop %v576
    %v578 = vmul.f32 %v576, %v577
    %v579 = vsub.f32 1.0, %v578
    %v580 = vmul.f32 %v577, %v579
    %v581 = vadd.f32 %v577, %v580
    %vm582 = vweird.f32 %v576
    %vm583 = vweird.f32 %v577
    %vm584 = vmor %vm582, %vm583
    %v585 = vsel %vm584, %v577, %v581
    %v586 = vand.u32 2147483647, %v576
    %vm587 = vcmp.eq.f32.partialorder %v586, 8.507059e+37
    %v588 = vand.u32 %v576, 2147483648
    %v589 = vor.u32 1.1754944e-38, %v588
    %v590 = vsel %vm587, %v589, %v585
    %v591 = vmul.f32 1.0, %v590
    %v592 = vadd.f32 %v290, %v550
    %v593 = vxor.u32 %v592, 2147483648
    %v594 = vmul.f32 %v593, 1.442695
    %v595 = vpow.pop %v594
    %v596 = vadd.f32 %v595, 1.0
    %v597 = vrcp.pop %v596
    %v598 = vmul.f32 %v596, %v597
    %v599 = vsub.f32 1.0, %v598
    %v600 = vmul.f32 %v597, %v599
    %v601 = vadd.f32 %v597, %v600
    %vm602 = vweird.f32 %v596
    %vm603 = vweird.f32 %v597
    %vm604 = vmor %vm602, %vm603
    %v605 = vsel %vm604, %v597, %v601
    %v606 = vand.u32 2147483647, %v596
    %vm607 = vcmp.eq.f32.partialorder %v606, 8.507059e+37
    %v608 = vand.u32 %v596, 2147483648
    %v609 = vor.u32 1.1754944e-38, %v608
    %v610 = vsel %vm607, %v609, %v605
    %v611 = vmul.f32 1.0, %v610
    %v612 = vadd.f32 %v570, %v401
    %v613 = vmul.f32 %v591, %v612
    %v614 = vadd.f32 %v331, %v613
    %v615 = vtanh.pop %v614
    %v616 = vsub.f32 1.0, %v611
    %v617 = vmul.f32 %v616, %v615
    %v618 = vmul.f32 %v611, %v510
    %v619 = vadd.f32 %v617, %v618
    %620 = vst [vmem:[#allocation2 + $0x8] sm:$0xff] %v619
    %621 = vmatpush.msra.mxu0 %v396
    %622 = vmatpush.msra.mxu0 %v393
    %623 = vmatpush.msra.mxu0 %v390
    %624 = vmatpush.msra.mxu0 %v387
    %625 = vmatpush.msra.mxu0 %v384
    %626 = vmatpush.msra.mxu0 %v381
    %627 = vmatpush.msra.mxu0 %v378
    %628 = vmatpush.msra.mxu0 %v375
    %629 = vmatpush.msra.mxu0 %v372
    %630 = vmatpush.msra.mxu0 %v369
    %631 = vmatpush.msra.mxu0 %v366
    %632 = vmatpush.msra.mxu0 %v363
    %633 = vmatpush.msra.mxu0 %v360
    %634 = vmatpush.msra.mxu0 %v357
    %635 = vmatpush.msra.mxu0 %v354
    %636 = vmatpush.msra.mxu0 %v351
    %637 = vmatmul.f32.gmra.mxu0 %v619
    %v638 = vpop.f32.mrf.mxu0
    %v639 = vadd.f32 0.0, %v638
    %640 = vdwg.mxu0
    %641 = vmatpush.msra.mxu0 %v397
    %642 = vmatpush.msra.mxu0 %v394
    %643 = vmatpush.msra.mxu0 %v391
    %644 = vmatpush.msra.mxu0 %v388
    %645 = vmatpush.msra.mxu0 %v385
    %646 = vmatpush.msra.mxu0 %v382
    %647 = vmatpush.msra.mxu0 %v379
    %648 = vmatpush.msra.mxu0 %v376
    %649 = vmatpush.msra.mxu0 %v373
    %650 = vmatpush.msra.mxu0 %v370
    %651 = vmatpush.msra.mxu0 %v367
    %652 = vmatpush.msra.mxu0 %v364
    %653 = vmatpush.msra.mxu0 %v361
    %654 = vmatpush.msra.mxu0 %v358
    %655 = vmatpush.msra.mxu0 %v355
    %656 = vmatpush.msra.mxu0 %v352
    %657 = vmatmul.f32.gmra.mxu0 %v619
    %v658 = vpop.f32.mrf.mxu0
    %v659 = vadd.f32 0.0, %v658
    %660 = vdwg.mxu0
    %661 = vmatpush.msra.mxu0 %v398
    %662 = vmatpush.msra.mxu0 %v395
    %663 = vmatpush.msra.mxu0 %v392
    %664 = vmatpush.msra.mxu0 %v389
    %665 = vmatpush.msra.mxu0 %v386
    %666 = vmatpush.msra.mxu0 %v383
    %667 = vmatpush.msra.mxu0 %v380
    %668 = vmatpush.msra.mxu0 %v377
    %669 = vmatpush.msra.mxu0 %v374
    %670 = vmatpush.msra.mxu0 %v371
    %671 = vmatpush.msra.mxu0 %v368
    %672 = vmatpush.msra.mxu0 %v365
    %673 = vmatpush.msra.mxu0 %v362
    %674 = vmatpush.msra.mxu0 %v359
    %675 = vmatpush.msra.mxu0 %v356
    %676 = vmatpush.msra.mxu0 %v353
    %677 = vmatmul.f32.gmra.mxu0 %v619
    %v678 = vpop.f32.mrf.mxu0
    %v679 = vadd.f32 0.0, %v678
    %680 = vdwg.mxu0
    %v681 = vadd.f32 %v252, %v639
    %v682 = vxor.u32 %v681, 2147483648
    %v683 = vmul.f32 %v682, 1.442695
    %v684 = vpow.pop %v683
    %v685 = vadd.f32 %v684, 1.0
    %v686 = vrcp.pop %v685
    %v687 = vmul.f32 %v685, %v686
    %v688 = vsub.f32 1.0, %v687
    %v689 = vmul.f32 %v686, %v688
    %v690 = vadd.f32 %v686, %v689
    %vm691 = vweird.f32 %v685
    %vm692 = vweird.f32 %v686
    %vm693 = vmor %vm691, %vm692
    %v694 = vsel %vm693, %v686, %v690
    %v695 = vand.u32 2147483647, %v685
    %vm696 = vcmp.eq.f32.partialorder %v695, 8.507059e+37
    %v697 = vand.u32 %v685, 2147483648
    %v698 = vor.u32 1.1754944e-38, %v697
    %v699 = vsel %vm696, %v698, %v694
    %v700 = vmul.f32 1.0, %v699
    %v701 = vadd.f32 %v293, %v659
    %v702 = vxor.u32 %v701, 2147483648
    %v703 = vmul.f32 %v702, 1.442695
    %v704 = vpow.pop %v703
    %v705 = vadd.f32 %v704, 1.0
    %v706 = vrcp.pop %v705
    %v707 = vmul.f32 %v705, %v706
    %v708 = vsub.f32 1.0, %v707
    %v709 = vmul.f32 %v706, %v708
    %v710 = vadd.f32 %v706, %v709
    %vm711 = vweird.f32 %v705
    %vm712 = vweird.f32 %v706
    %vm713 = vmor %vm711, %vm712
    %v714 = vsel %vm713, %v706, %v710
    %v715 = vand.u32 2147483647, %v705
    %vm716 = vcmp.eq.f32.partialorder %v715, 8.507059e+37
    %v717 = vand.u32 %v705, 2147483648
    %v718 = vor.u32 1.1754944e-38, %v717
    %v719 = vsel %vm716, %v718, %v714
    %v720 = vmul.f32 1.0, %v719
    %v721 = vadd.f32 %v679, %v401
    %v722 = vmul.f32 %v700, %v721
    %v723 = vadd.f32 %v334, %v722
    %v724 = vtanh.pop %v723
    %v725 = vsub.f32 1.0, %v720
    %v726 = vmul.f32 %v725, %v724
    %v727 = vmul.f32 %v720, %v619
    %v728 = vadd.f32 %v726, %v727
    %729 = vst [vmem:[#allocation2 + $0x10] sm:$0xff] %v728
    %730 = vmatpush.msra.mxu0 %v396
    %731 = vmatpush.msra.mxu0 %v393
    %732 = vmatpush.msra.mxu0 %v390
    %733 = vmatpush.msra.mxu0 %v387
    %734 = vmatpush.msra.mxu0 %v384
    %735 = vmatpush.msra.mxu0 %v381
    %736 = vmatpush.msra.mxu0 %v378
    %737 = vmatpush.msra.mxu0 %v375
    %738 = vmatpush.msra.mxu0 %v372
    %739 = vmatpush.msra.mxu0 %v369
    %740 = vmatpush.msra.mxu0 %v366
    %741 = vmatpush.msra.mxu0 %v363
    %742 = vmatpush.msra.mxu0 %v360
    %743 = vmatpush.msra.mxu0 %v357
    %744 = vmatpush.msra.mxu0 %v354
    %745 = vmatpush.msra.mxu0 %v351
    %746 = vmatmul.f32.gmra.mxu0 %v728
    %v747 = vpop.f32.mrf.mxu0
    %v748 = vadd.f32 0.0, %v747
    %749 = vdwg.mxu0
    %750 = vmatpush.msra.mxu0 %v397
    %751 = vmatpush.msra.mxu0 %v394
    %752 = vmatpush.msra.mxu0 %v391
    %753 = vmatpush.msra.mxu0 %v388
    %754 = vmatpush.msra.mxu0 %v385
    %755 = vmatpush.msra.mxu0 %v382
    %756 = vmatpush.msra.mxu0 %v379
    %757 = vmatpush.msra.mxu0 %v376
    %758 = vmatpush.msra.mxu0 %v373
    %759 = vmatpush.msra.mxu0 %v370
    %760 = vmatpush.msra.mxu0 %v367
    %761 = vmatpush.msra.mxu0 %v364
    %762 = vmatpush.msra.mxu0 %v361
    %763 = vmatpush.msra.mxu0 %v358
    %764 = vmatpush.msra.mxu0 %v355
    %765 = vmatpush.msra.mxu0 %v352
    %766 = vmatmul.f32.gmra.mxu0 %v728
    %v767 = vpop.f32.mrf.mxu0
    %v768 = vadd.f32 0.0, %v767
    %769 = vdwg.mxu0
    %770 = vmatpush.msra.mxu0 %v398
    %771 = vmatpush.msra.mxu0 %v395
    %772 = vmatpush.msra.mxu0 %v392
    %773 = vmatpush.msra.mxu0 %v389
    %774 = vmatpush.msra.mxu0 %v386
    %775 = vmatpush.msra.mxu0 %v383
    %776 = vmatpush.msra.mxu0 %v380
    %777 = vmatpush.msra.mxu0 %v377
    %778 = vmatpush.msra.mxu0 %v374
    %779 = vmatpush.msra.mxu0 %v371
    %780 = vmatpush.msra.mxu0 %v368
    %781 = vmatpush.msra.mxu0 %v365
    %782 = vmatpush.msra.mxu0 %v362
    %783 = vmatpush.msra.mxu0 %v359
    %784 = vmatpush.msra.mxu0 %v356
    %785 = vmatpush.msra.mxu0 %v353
    %786 = vmatmul.f32.gmra.mxu0 %v728
    %v787 = vpop.f32.mrf.mxu0
    %v788 = vadd.f32 0.0, %v787
    %789 = vdwg.mxu0
    %v790 = vadd.f32 %v255, %v748
    %v791 = vxor.u32 %v790, 2147483648
    %v792 = vmul.f32 %v791, 1.442695
    %v793 = vpow.pop %v792
    %v794 = vadd.f32 %v793, 1.0
    %v795 = vrcp.pop %v794
    %v796 = vmul.f32 %v794, %v795
    %v797 = vsub.f32 1.0, %v796
    %v798 = vmul.f32 %v795, %v797
    %v799 = vadd.f32 %v795, %v798
    %vm800 = vweird.f32 %v794
    %vm801 = vweird.f32 %v795
    %vm802 = vmor %vm800, %vm801
    %v803 = vsel %vm802, %v795, %v799
    %v804 = vand.u32 2147483647, %v794
    %vm805 = vcmp.eq.f32.partialorder %v804, 8.507059e+37
    %v806 = vand.u32 %v794, 2147483648
    %v807 = vor.u32 1.1754944e-38, %v806
    %v808 = vsel %vm805, %v807, %v803
    %v809 = vmul.f32 1.0, %v808
    %v810 = vadd.f32 %v296, %v768
    %v811 = vxor.u32 %v810, 2147483648
    %v812 = vmul.f32 %v811, 1.442695
    %v813 = vpow.pop %v812
    %v814 = vadd.f32 %v813, 1.0
    %v815 = vrcp.pop %v814
    %v816 = vmul.f32 %v814, %v815
    %v817 = vsub.f32 1.0, %v816
    %v818 = vmul.f32 %v815, %v817
    %v819 = vadd.f32 %v815, %v818
    %vm820 = vweird.f32 %v814
    %vm821 = vweird.f32 %v815
    %vm822 = vmor %vm820, %vm821
    %v823 = vsel %vm822, %v815, %v819
    %v824 = vand.u32 2147483647, %v814
    %vm825 = vcmp.eq.f32.partialorder %v824, 8.507059e+37
    %v826 = vand.u32 %v814, 2147483648
    %v827 = vor.u32 1.1754944e-38, %v826
    %v828 = vsel %vm825, %v827, %v823
    %v829 = vmul.f32 1.0, %v828
    %v830 = vadd.f32 %v788, %v401
    %v831 = vmul.f32 %v809, %v830
    %v832 = vadd.f32 %v337, %v831
    %v833 = vtanh.pop %v832
    %v834 = vsub.f32 1.0, %v829
    %v835 = vmul.f32 %v834, %v833
    %v836 = vmul.f32 %v829, %v728
    %v837 = vadd.f32 %v835, %v836
    %838 = vst [vmem:[#allocation2 + $0x18] sm:$0xff] %v837
    %839 = vmatpush.msra.mxu0 %v396
    %840 = vmatpush.msra.mxu0 %v393
    %841 = vmatpush.msra.mxu0 %v390
    %842 = vmatpush.msra.mxu0 %v387
    %843 = vmatpush.msra.mxu0 %v384
    %844 = vmatpush.msra.mxu0 %v381
    %845 = vmatpush.msra.mxu0 %v378
    %846 = vmatpush.msra.mxu0 %v375
    %847 = vmatpush.msra.mxu0 %v372
    %848 = vmatpush.msra.mxu0 %v369
    %849 = vmatpush.msra.mxu0 %v366
    %850 = vmatpush.msra.mxu0 %v363
    %851 = vmatpush.msra.mxu0 %v360
    %852 = vmatpush.msra.mxu0 %v357
    %853 = vmatpush.msra.mxu0 %v354
    %854 = vmatpush.msra.mxu0 %v351
    %855 = vmatmul.f32.gmra.mxu0 %v837
    %v856 = vpop.f32.mrf.mxu0
    %v857 = vadd.f32 0.0, %v856
    %858 = vdwg.mxu0
    %859 = vmatpush.msra.mxu0 %v397
    %860 = vmatpush.msra.mxu0 %v394
    %861 = vmatpush.msra.mxu0 %v391
    %862 = vmatpush.msra.mxu0 %v388
    %863 = vmatpush.msra.mxu0 %v385
    %864 = vmatpush.msra.mxu0 %v382
    %865 = vmatpush.msra.mxu0 %v379
    %866 = vmatpush.msra.mxu0 %v376
    %867 = vmatpush.msra.mxu0 %v373
    %868 = vmatpush.msra.mxu0 %v370
    %869 = vmatpush.msra.mxu0 %v367
    %870 = vmatpush.msra.mxu0 %v364
    %871 = vmatpush.msra.mxu0 %v361
    %872 = vmatpush.msra.mxu0 %v358
    %873 = vmatpush.msra.mxu0 %v355
    %874 = vmatpush.msra.mxu0 %v352
    %875 = vmatmul.f32.gmra.mxu0 %v837
    %v876 = vpop.f32.mrf.mxu0
    %v877 = vadd.f32 0.0, %v876
    %878 = vdwg.mxu0
    %879 = vmatpush.msra.mxu0 %v398
    %880 = vmatpush.msra.mxu0 %v395
    %881 = vmatpush.msra.mxu0 %v392
    %882 = vmatpush.msra.mxu0 %v389
    %883 = vmatpush.msra.mxu0 %v386
    %884 = vmatpush.msra.mxu0 %v383
    %885 = vmatpush.msra.mxu0 %v380
    %886 = vmatpush.msra.mxu0 %v377
    %887 = vmatpush.msra.mxu0 %v374
    %888 = vmatpush.msra.mxu0 %v371
    %889 = vmatpush.msra.mxu0 %v368
    %890 = vmatpush.msra.mxu0 %v365
    %891 = vmatpush.msra.mxu0 %v362
    %892 = vmatpush.msra.mxu0 %v359
    %893 = vmatpush.msra.mxu0 %v356
    %894 = vmatpush.msra.mxu0 %v353
    %895 = vmatmul.f32.gmra.mxu0 %v837
    %v896 = vpop.f32.mrf.mxu0
    %v897 = vadd.f32 0.0, %v896
    %898 = vdwg.mxu0
    %v899 = vadd.f32 %v258, %v857
    %v900 = vxor.u32 %v899, 2147483648
    %v901 = vmul.f32 %v900, 1.442695
    %v902 = vpow.pop %v901
    %v903 = vadd.f32 %v902, 1.0
    %v904 = vrcp.pop %v903
    %v905 = vmul.f32 %v903, %v904
    %v906 = vsub.f32 1.0, %v905
    %v907 = vmul.f32 %v904, %v906
    %v908 = vadd.f32 %v904, %v907
    %vm909 = vweird.f32 %v903
    %vm910 = vweird.f32 %v904
    %vm911 = vmor %vm909, %vm910
    %v912 = vsel %vm911, %v904, %v908
    %v913 = vand.u32 2147483647, %v903
    %vm914 = vcmp.eq.f32.partialorder %v913, 8.507059e+37
    %v915 = vand.u32 %v903, 2147483648
    %v916 = vor.u32 1.1754944e-38, %v915
    %v917 = vsel %vm914, %v916, %v912
    %v918 = vmul.f32 1.0, %v917
    %v919 = vadd.f32 %v299, %v877
    %v920 = vxor.u32 %v919, 2147483648
    %v921 = vmul.f32 %v920, 1.442695
    %v922 = vpow.pop %v921
    %v923 = vadd.f32 %v922, 1.0
    %v924 = vrcp.pop %v923
    %v925 = vmul.f32 %v923, %v924
    %v926 = vsub.f32 1.0, %v925
    %v927 = vmul.f32 %v924, %v926
    %v928 = vadd.f32 %v924, %v927
    %vm929 = vweird.f32 %v923
    %vm930 = vweird.f32 %v924
    %vm931 = vmor %vm929, %vm930
    %v932 = vsel %vm931, %v924, %v928
    %v933 = vand.u32 2147483647, %v923
    %vm934 = vcmp.eq.f32.partialorder %v933, 8.507059e+37
    %v935 = vand.u32 %v923, 2147483648
    %v936 = vor.u32 1.1754944e-38, %v935
    %v937 = vsel %vm934, %v936, %v932
    %v938 = vmul.f32 1.0, %v937
    %v939 = vadd.f32 %v897, %v401
    %v940 = vmul.f32 %v918, %v939
    %v941 = vadd.f32 %v340, %v940
    %v942 = vtanh.pop %v941
    %v943 = vsub.f32 1.0, %v938
    %v944 = vmul.f32 %v943, %v942
    %v945 = vmul.f32 %v938, %v837
    %v946 = vadd.f32 %v944, %v945
    %947 = vst [vmem:[#allocation2 + $0x20] sm:$0xff] %v946
    %948 = vmatpush.msra.mxu0 %v396
    %949 = vmatpush.msra.mxu0 %v393
    %950 = vmatpush.msra.mxu0 %v390
    %951 = vmatpush.msra.mxu0 %v387
    %952 = vmatpush.msra.mxu0 %v384
    %953 = vmatpush.msra.mxu0 %v381
    %954 = vmatpush.msra.mxu0 %v378
    %955 = vmatpush.msra.mxu0 %v375
    %956 = vmatpush.msra.mxu0 %v372
    %957 = vmatpush.msra.mxu0 %v369
    %958 = vmatpush.msra.mxu0 %v366
    %959 = vmatpush.msra.mxu0 %v363
    %960 = vmatpush.msra.mxu0 %v360
    %961 = vmatpush.msra.mxu0 %v357
    %962 = vmatpush.msra.mxu0 %v354
    %963 = vmatpush.msra.mxu0 %v351
    %964 = vmatmul.f32.gmra.mxu0 %v946
    %v965 = vpop.f32.mrf.mxu0
    %v966 = vadd.f32 0.0, %v965
    %967 = vdwg.mxu0
    %968 = vmatpush.msra.mxu0 %v397
    %969 = vmatpush.msra.mxu0 %v394
    %970 = vmatpush.msra.mxu0 %v391
    %971 = vmatpush.msra.mxu0 %v388
    %972 = vmatpush.msra.mxu0 %v385
    %973 = vmatpush.msra.mxu0 %v382
    %974 = vmatpush.msra.mxu0 %v379
    %975 = vmatpush.msra.mxu0 %v376
    %976 = vmatpush.msra.mxu0 %v373
    %977 = vmatpush.msra.mxu0 %v370
    %978 = vmatpush.msra.mxu0 %v367
    %979 = vmatpush.msra.mxu0 %v364
    %980 = vmatpush.msra.mxu0 %v361
    %981 = vmatpush.msra.mxu0 %v358
    %982 = vmatpush.msra.mxu0 %v355
    %983 = vmatpush.msra.mxu0 %v352
    %984 = vmatmul.f32.gmra.mxu0 %v946
    %v985 = vpop.f32.mrf.mxu0
    %v986 = vadd.f32 0.0, %v985
    %987 = vdwg.mxu0
    %988 = vmatpush.msra.mxu0 %v398
    %989 = vmatpush.msra.mxu0 %v395
    %990 = vmatpush.msra.mxu0 %v392
    %991 = vmatpush.msra.mxu0 %v389
    %992 = vmatpush.msra.mxu0 %v386
    %993 = vmatpush.msra.mxu0 %v383
    %994 = vmatpush.msra.mxu0 %v380
    %995 = vmatpush.msra.mxu0 %v377
    %996 = vmatpush.msra.mxu0 %v374
    %997 = vmatpush.msra.mxu0 %v371
    %998 = vmatpush.msra.mxu0 %v368
    %999 = vmatpush.msra.mxu0 %v365
    %1000 = vmatpush.msra.mxu0 %v362
    %1001 = vmatpush.msra.mxu0 %v359
    %1002 = vmatpush.msra.mxu0 %v356
    %1003 = vmatpush.msra.mxu0 %v353
    %1004 = vmatmul.f32.gmra.mxu0 %v946
    %v1005 = vpop.f32.mrf.mxu0
    %v1006 = vadd.f32 0.0, %v1005
    %1007 = vdwg.mxu0
    %v1008 = vadd.f32 %v261, %v966
    %v1009 = vxor.u32 %v1008, 2147483648
    %v1010 = vmul.f32 %v1009, 1.442695
    %v1011 = vpow.pop %v1010
    %v1012 = vadd.f32 %v1011, 1.0
    %v1013 = vrcp.pop %v1012
    %v1014 = vmul.f32 %v1012, %v1013
    %v1015 = vsub.f32 1.0, %v1014
    %v1016 = vmul.f32 %v1013, %v1015
    %v1017 = vadd.f32 %v1013, %v1016
    %vm1018 = vweird.f32 %v1012
    %vm1019 = vweird.f32 %v1013
    %vm1020 = vmor %vm1018, %vm1019
    %v1021 = vsel %vm1020, %v1013, %v1017
    %v1022 = vand.u32 2147483647, %v1012
    %vm1023 = vcmp.eq.f32.partialorder %v1022, 8.507059e+37
    %v1024 = vand.u32 %v1012, 2147483648
    %v1025 = vor.u32 1.1754944e-38, %v1024
    %v1026 = vsel %vm1023, %v1025, %v1021
    %v1027 = vmul.f32 1.0, %v1026
    %v1028 = vadd.f32 %v302, %v986
    %v1029 = vxor.u32 %v1028, 2147483648
    %v1030 = vmul.f32 %v1029, 1.442695
    %v1031 = vpow.pop %v1030
    %v1032 = vadd.f32 %v1031, 1.0
    %v1033 = vrcp.pop %v1032
    %v1034 = vmul.f32 %v1032, %v1033
    %v1035 = vsub.f32 1.0, %v1034
    %v1036 = vmul.f32 %v1033, %v1035
    %v1037 = vadd.f32 %v1033, %v1036
    %vm1038 = vweird.f32 %v1032
    %vm1039 = vweird.f32 %v1033
    %vm1040 = vmor %vm1038, %vm1039
    %v1041 = vsel %vm1040, %v1033, %v1037
    %v1042 = vand.u32 2147483647, %v1032
    %vm1043 = vcmp.eq.f32.partialorder %v1042, 8.507059e+37
    %v1044 = vand.u32 %v1032, 2147483648
    %v1045 = vor.u32 1.1754944e-38, %v1044
    %v1046 = vsel %vm1043, %v1045, %v1041
    %v1047 = vmul.f32 1.0, %v1046
    %v1048 = vadd.f32 %v1006, %v401
    %v1049 = vmul.f32 %v1027, %v1048
    %v1050 = vadd.f32 %v343, %v1049
    %v1051 = vtanh.pop %v1050
    %v1052 = vsub.f32 1.0, %v1047
    %v1053 = vmul.f32 %v1052, %v1051
    %v1054 = vmul.f32 %v1047, %v946
    %v1055 = vadd.f32 %v1053, %v1054
    %1056 = vst [vmem:[#allocation2 + $0x28] sm:$0xff] %v1055
    %1057 = vmatpush.msra.mxu0 %v396
    %1058 = vmatpush.msra.mxu0 %v393
    %1059 = vmatpush.msra.mxu0 %v390
    %1060 = vmatpush.msra.mxu0 %v387
    %1061 = vmatpush.msra.mxu0 %v384
    %1062 = vmatpush.msra.mxu0 %v381
    %1063 = vmatpush.msra.mxu0 %v378
    %1064 = vmatpush.msra.mxu0 %v375
    %1065 = vmatpush.msra.mxu0 %v372
    %1066 = vmatpush.msra.mxu0 %v369
    %1067 = vmatpush.msra.mxu0 %v366
    %1068 = vmatpush.msra.mxu0 %v363
    %1069 = vmatpush.msra.mxu0 %v360
    %1070 = vmatpush.msra.mxu0 %v357
    %1071 = vmatpush.msra.mxu0 %v354
    %1072 = vmatpush.msra.mxu0 %v351
    %1073 = vmatmul.f32.gmra.mxu0 %v1055
    %v1074 = vpop.f32.mrf.mxu0
    %v1075 = vadd.f32 0.0, %v1074
    %1076 = vdwg.mxu0
    %1077 = vmatpush.msra.mxu0 %v397
    %1078 = vmatpush.msra.mxu0 %v394
    %1079 = vmatpush.msra.mxu0 %v391
    %1080 = vmatpush.msra.mxu0 %v388
    %1081 = vmatpush.msra.mxu0 %v385
    %1082 = vmatpush.msra.mxu0 %v382
    %1083 = vmatpush.msra.mxu0 %v379
    %1084 = vmatpush.msra.mxu0 %v376
    %1085 = vmatpush.msra.mxu0 %v373
    %1086 = vmatpush.msra.mxu0 %v370
    %1087 = vmatpush.msra.mxu0 %v367
    %1088 = vmatpush.msra.mxu0 %v364
    %1089 = vmatpush.msra.mxu0 %v361
    %1090 = vmatpush.msra.mxu0 %v358
    %1091 = vmatpush.msra.mxu0 %v355
    %1092 = vmatpush.msra.mxu0 %v352
    %1093 = vmatmul.f32.gmra.mxu0 %v1055
    %v1094 = vpop.f32.mrf.mxu0
    %v1095 = vadd.f32 0.0, %v1094
    %1096 = vdwg.mxu0
    %1097 = vmatpush.msra.mxu0 %v398
    %1098 = vmatpush.msra.mxu0 %v395
    %1099 = vmatpush.msra.mxu0 %v392
    %1100 = vmatpush.msra.mxu0 %v389
    %1101 = vmatpush.msra.mxu0 %v386
    %1102 = vmatpush.msra.mxu0 %v383
    %1103 = vmatpush.msra.mxu0 %v380
    %1104 = vmatpush.msra.mxu0 %v377
    %1105 = vmatpush.msra.mxu0 %v374
    %1106 = vmatpush.msra.mxu0 %v371
    %1107 = vmatpush.msra.mxu0 %v368
    %1108 = vmatpush.msra.mxu0 %v365
    %1109 = vmatpush.msra.mxu0 %v362
    %1110 = vmatpush.msra.mxu0 %v359
    %1111 = vmatpush.msra.mxu0 %v356
    %1112 = vmatpush.msra.mxu0 %v353
    %1113 = vmatmul.f32.gmra.mxu0 %v1055
    %v1114 = vpop.f32.mrf.mxu0
    %v1115 = vadd.f32 0.0, %v1114
    %1116 = vdwg.mxu0
    %v1117 = vadd.f32 %v264, %v1075
    %v1118 = vxor.u32 %v1117, 2147483648
    %v1119 = vmul.f32 %v1118, 1.442695
    %v1120 = vpow.pop %v1119
    %v1121 = vadd.f32 %v1120, 1.0
    %v1122 = vrcp.pop %v1121
    %v1123 = vmul.f32 %v1121, %v1122
    %v1124 = vsub.f32 1.0, %v1123
    %v1125 = vmul.f32 %v1122, %v1124
    %v1126 = vadd.f32 %v1122, %v1125
    %vm1127 = vweird.f32 %v1121
    %vm1128 = vweird.f32 %v1122
    %vm1129 = vmor %vm1127, %vm1128
    %v1130 = vsel %vm1129, %v1122, %v1126
    %v1131 = vand.u32 2147483647, %v1121
    %vm1132 = vcmp.eq.f32.partialorder %v1131, 8.507059e+37
    %v1133 = vand.u32 %v1121, 2147483648
    %v1134 = vor.u32 1.1754944e-38, %v1133
    %v1135 = vsel %vm1132, %v1134, %v1130
    %v1136 = vmul.f32 1.0, %v1135
    %v1137 = vadd.f32 %v305, %v1095
    %v1138 = vxor.u32 %v1137, 2147483648
    %v1139 = vmul.f32 %v1138, 1.442695
    %v1140 = vpow.pop %v1139
    %v1141 = vadd.f32 %v1140, 1.0
    %v1142 = vrcp.pop %v1141
    %v1143 = vmul.f32 %v1141, %v1142
    %v1144 = vsub.f32 1.0, %v1143
    %v1145 = vmul.f32 %v1142, %v1144
    %v1146 = vadd.f32 %v1142, %v1145
    %vm1147 = vweird.f32 %v1141
    %vm1148 = vweird.f32 %v1142
    %vm1149 = vmor %vm1147, %vm1148
    %v1150 = vsel %vm1149, %v1142, %v1146
    %v1151 = vand.u32 2147483647, %v1141
    %vm1152 = vcmp.eq.f32.partialorder %v1151, 8.507059e+37
    %v1153 = vand.u32 %v1141, 2147483648
    %v1154 = vor.u32 1.1754944e-38, %v1153
    %v1155 = vsel %vm1152, %v1154, %v1150
    %v1156 = vmul.f32 1.0, %v1155
    %v1157 = vadd.f32 %v1115, %v401
    %v1158 = vmul.f32 %v1136, %v1157
    %v1159 = vadd.f32 %v346, %v1158
    %v1160 = vtanh.pop %v1159
    %v1161 = vsub.f32 1.0, %v1156
    %v1162 = vmul.f32 %v1161, %v1160
    %v1163 = vmul.f32 %v1156, %v1055
    %v1164 = vadd.f32 %v1162, %v1163
    %1165 = vst [vmem:[#allocation2 + $0x30] sm:$0xff] %v1164
    %1166 = vmatpush.msra.mxu0 %v396
    %1167 = vmatpush.msra.mxu0 %v393
    %1168 = vmatpush.msra.mxu0 %v390
    %1169 = vmatpush.msra.mxu0 %v387
    %1170 = vmatpush.msra.mxu0 %v384
    %1171 = vmatpush.msra.mxu0 %v381
    %1172 = vmatpush.msra.mxu0 %v378
    %1173 = vmatpush.msra.mxu0 %v375
    %1174 = vmatpush.msra.mxu0 %v372
    %1175 = vmatpush.msra.mxu0 %v369
    %1176 = vmatpush.msra.mxu0 %v366
    %1177 = vmatpush.msra.mxu0 %v363
    %1178 = vmatpush.msra.mxu0 %v360
    %1179 = vmatpush.msra.mxu0 %v357
    %1180 = vmatpush.msra.mxu0 %v354
    %1181 = vmatpush.msra.mxu0 %v351
    %1182 = vmatmul.f32.gmra.mxu0 %v1164
    %v1183 = vpop.f32.mrf.mxu0
    %v1184 = vadd.f32 0.0, %v1183
    %1185 = vdwg.mxu0
    %1186 = vmatpush.msra.mxu0 %v397
    %1187 = vmatpush.msra.mxu0 %v394
    %1188 = vmatpush.msra.mxu0 %v391
    %1189 = vmatpush.msra.mxu0 %v388
    %1190 = vmatpush.msra.mxu0 %v385
    %1191 = vmatpush.msra.mxu0 %v382
    %1192 = vmatpush.msra.mxu0 %v379
    %1193 = vmatpush.msra.mxu0 %v376
    %1194 = vmatpush.msra.mxu0 %v373
    %1195 = vmatpush.msra.mxu0 %v370
    %1196 = vmatpush.msra.mxu0 %v367
    %1197 = vmatpush.msra.mxu0 %v364
    %1198 = vmatpush.msra.mxu0 %v361
    %1199 = vmatpush.msra.mxu0 %v358
    %1200 = vmatpush.msra.mxu0 %v355
    %1201 = vmatpush.msra.mxu0 %v352
    %1202 = vmatmul.f32.gmra.mxu0 %v1164
    %v1203 = vpop.f32.mrf.mxu0
    %v1204 = vadd.f32 0.0, %v1203
    %1205 = vdwg.mxu0
    %1206 = vmatpush.msra.mxu0 %v398
    %1207 = vmatpush.msra.mxu0 %v395
    %1208 = vmatpush.msra.mxu0 %v392
    %1209 = vmatpush.msra.mxu0 %v389
    %1210 = vmatpush.msra.mxu0 %v386
    %1211 = vmatpush.msra.mxu0 %v383
    %1212 = vmatpush.msra.mxu0 %v380
    %1213 = vmatpush.msra.mxu0 %v377
    %1214 = vmatpush.msra.mxu0 %v374
    %1215 = vmatpush.msra.mxu0 %v371
    %1216 = vmatpush.msra.mxu0 %v368
    %1217 = vmatpush.msra.mxu0 %v365
    %1218 = vmatpush.msra.mxu0 %v362
    %1219 = vmatpush.msra.mxu0 %v359
    %1220 = vmatpush.msra.mxu0 %v356
    %1221 = vmatpush.msra.mxu0 %v353
    %1222 = vmatmul.f32.gmra.mxu0 %v1164
    %v1223 = vpop.f32.mrf.mxu0
    %v1224 = vadd.f32 0.0, %v1223
    %1225 = vdwg.mxu0
    %v1226 = vadd.f32 %v267, %v1184
    %v1227 = vxor.u32 %v1226, 2147483648
    %v1228 = vmul.f32 %v1227, 1.442695
    %v1229 = vpow.pop %v1228
    %v1230 = vadd.f32 %v1229, 1.0
    %v1231 = vrcp.pop %v1230
    %v1232 = vmul.f32 %v1230, %v1231
    %v1233 = vsub.f32 1.0, %v1232
    %v1234 = vmul.f32 %v1231, %v1233
    %v1235 = vadd.f32 %v1231, %v1234
    %vm1236 = vweird.f32 %v1230
    %vm1237 = vweird.f32 %v1231
    %vm1238 = vmor %vm1236, %vm1237
    %v1239 = vsel %vm1238, %v1231, %v1235
    %v1240 = vand.u32 2147483647, %v1230
    %vm1241 = vcmp.eq.f32.partialorder %v1240, 8.507059e+37
    %v1242 = vand.u32 %v1230, 2147483648
    %v1243 = vor.u32 1.1754944e-38, %v1242
    %v1244 = vsel %vm1241, %v1243, %v1239
    %v1245 = vmul.f32 1.0, %v1244
    %v1246 = vadd.f32 %v308, %v1204
    %v1247 = vxor.u32 %v1246, 2147483648
    %v1248 = vmul.f32 %v1247, 1.442695
    %v1249 = vpow.pop %v1248
    %v1250 = vadd.f32 %v1249, 1.0
    %v1251 = vrcp.pop %v1250
    %v1252 = vmul.f32 %v1250, %v1251
    %v1253 = vsub.f32 1.0, %v1252
    %v1254 = vmul.f32 %v1251, %v1253
    %v1255 = vadd.f32 %v1251, %v1254
    %vm1256 = vweird.f32 %v1250
    %vm1257 = vweird.f32 %v1251
    %vm1258 = vmor %vm1256, %vm1257
    %v1259 = vsel %vm1258, %v1251, %v1255
    %v1260 = vand.u32 2147483647, %v1250
    %vm1261 = vcmp.eq.f32.partialorder %v1260, 8.507059e+37
    %v1262 = vand.u32 %v1250, 2147483648
    %v1263 = vor.u32 1.1754944e-38, %v1262
    %v1264 = vsel %vm1261, %v1263, %v1259
    %v1265 = vmul.f32 1.0, %v1264
    %v1266 = vadd.f32 %v1224, %v401
    %v1267 = vmul.f32 %v1245, %v1266
    %v1268 = vadd.f32 %v349, %v1267
    %v1269 = vtanh.pop %v1268
    %v1270 = vsub.f32 1.0, %v1265
    %v1271 = vmul.f32 %v1270, %v1269
    %v1272 = vmul.f32 %v1265, %v1164
    %v1273 = vadd.f32 %v1271, %v1272
    %1274 = vst [vmem:[#allocation2 + $0x38] sm:$0xff] %v1273
    %v1275 = vld [vmem:[#allocation2] sm:$0xff]
    %v1276 = vld [vmem:[#allocation2 + $0x8] sm:$0xff]
    %v1277 = vld [vmem:[#allocation2 + $0x10] sm:$0xff]
    %v1278 = vld [vmem:[#allocation2 + $0x18] sm:$0xff]
    %v1279 = vld [vmem:[#allocation2 + $0x20] sm:$0xff]
    %v1280 = vld [vmem:[#allocation2 + $0x28] sm:$0xff]
    %v1281 = vld [vmem:[#allocation2 + $0x30] sm:$0xff]
    %v1282 = vld [vmem:[#allocation2 + $0x38] sm:$0xff]
    %v1283 = vld [vmem:[#allocation9] sm:$0xff]
    %v1284 = vld [vmem:[#allocation9 + $0x8] sm:$0xff]
    %v1285 = vld [vmem:[#allocation9 + $0x10] sm:$0xff]
    %v1286 = vld [vmem:[#allocation9 + $0x18] sm:$0xff]
    %v1287 = vld [vmem:[#allocation9 + $0x20] sm:$0xff]
    %v1288 = vld [vmem:[#allocation9 + $0x28] sm:$0xff]
    %v1289 = vld [vmem:[#allocation9 + $0x30] sm:$0xff]
    %v1290 = vld [vmem:[#allocation9 + $0x38] sm:$0xff]
    %v1291 = vld [vmem:[#allocation9 + $0x40] sm:$0xff]
    %v1292 = vld [vmem:[#allocation9 + $0x48] sm:$0xff]
    %v1293 = vld [vmem:[#allocation9 + $0x50] sm:$0xff]
    %v1294 = vld [vmem:[#allocation9 + $0x58] sm:$0xff]
    %v1295 = vld [vmem:[#allocation9 + $0x60] sm:$0xff]
    %v1296 = vld [vmem:[#allocation9 + $0x68] sm:$0xff]
    %v1297 = vld [vmem:[#allocation9 + $0x70] sm:$0xff]
    %v1298 = vld [vmem:[#allocation9 + $0x78] sm:$0xff]
    %v1299 = vld [vmem:[%s8] sm:$0x1]
    %v1301 = vperm.slane %v1299, 0
    %1303 = vmatpush.msra.mxu0 %v1298
    %1304 = vmatpush.msra.mxu0 %v1297
    %1305 = vmatpush.msra.mxu0 %v1296
    %1306 = vmatpush.msra.mxu0 %v1295
    %1307 = vmatpush.msra.mxu0 %v1294
    %1308 = vmatpush.msra.mxu0 %v1293
    %1309 = vmatpush.msra.mxu0 %v1292
    %1310 = vmatpush.msra.mxu0 %v1291
    %1311 = vmatpush.msra.mxu0 %v1290
    %1312 = vmatpush.msra.mxu0 %v1289
    %1313 = vmatpush.msra.mxu0 %v1288
    %1314 = vmatpush.msra.mxu0 %v1287
    %1315 = vmatpush.msra.mxu0 %v1286
    %1316 = vmatpush.msra.mxu0 %v1285
    %1317 = vmatpush.msra.mxu0 %v1284
    %1318 = vmatpush.msra.mxu0 %v1283
    %1319 = vmatmul.f32.gmra.mxu0 %v1275
    %v1320 = vpop.f32.mrf.mxu0
    %v1321 = vadd.f32 %v1301, %v1320
    %1322 = vmatmul.f32.gmra.mxu0 %v1276
    %v1323 = vpop.f32.mrf.mxu0
    %v1324 = vadd.f32 %v1301, %v1323
    %1325 = vmatmul.f32.gmra.mxu0 %v1277
    %v1326 = vpop.f32.mrf.mxu0
    %v1327 = vadd.f32 %v1301, %v1326
    %1328 = vmatmul.f32.gmra.mxu0 %v1278
    %v1329 = vpop.f32.mrf.mxu0
    %v1330 = vadd.f32 %v1301, %v1329
    %1331 = vmatmul.f32.gmra.mxu0 %v1279
    %v1332 = vpop.f32.mrf.mxu0
    %v1333 = vadd.f32 %v1301, %v1332
    %1334 = vmatmul.f32.gmra.mxu0 %v1280
    %v1335 = vpop.f32.mrf.mxu0
    %v1336 = vadd.f32 %v1301, %v1335
    %1337 = vmatmul.f32.gmra.mxu0 %v1281
    %v1338 = vpop.f32.mrf.mxu0
    %v1339 = vadd.f32 %v1301, %v1338
    %1340 = vmatmul.f32.gmra.mxu0 %v1282
    %v1341 = vpop.f32.mrf.mxu0
    %v1342 = vadd.f32 %v1301, %v1341
    %1343 = vdwg.mxu0
    %1344 = vst [vmem:[#allocation11] sm:$0xff] %v1321
    %1345 = vst [vmem:[#allocation11 + $0x8] sm:$0xff] %v1324
    %1346 = vst [vmem:[#allocation11 + $0x10] sm:$0xff] %v1327
    %1347 = vst [vmem:[#allocation11 + $0x18] sm:$0xff] %v1330
    %1348 = vst [vmem:[#allocation11 + $0x20] sm:$0xff] %v1333
    %1349 = vst [vmem:[#allocation11 + $0x28] sm:$0xff] %v1336
    %1350 = vst [vmem:[#allocation11 + $0x30] sm:$0xff] %v1339
    %1351 = vst [vmem:[#allocation11 + $0x38] sm:$0xff] %v1342
    // Predicated region
    $region54: #{tpu_custom_call.1} parent=1 // pred_check
      _
    $region55: #{tpu_custom_call.1} parent=1 // pred_check_branch
      %1353 = sbr.rel (0) target = $region57
    $region56: #{tpu_custom_call.1} parent=1 // pred_region
      %1355 = vsyncadd [#allocation5], 0
      %s1356 = sshll.u32 [#allocation11], 4
      %s1357 = int_to_ptr.vmem [resolvable:$true] %s1356
      %s1358 = sshll.u32 %s9, 4
      %s1359 = int_to_ptr.hbm [resolvable:$true] %s1358
      %1364 = dma.vmem_to_hbm [thread:$0]  %s1357, 1024, %s1359, [#allocation5], 128, 128, 8
    $region57: #{tpu_custom_call.1} parent=1 // pred_fallthru
      _
    // Predicated region
    $region58: #{tpu_custom_call.1} parent=1 // pred_check
      _
    $region59: #{tpu_custom_call.1} parent=1 // pred_check_branch
      %1366 = sbr.rel (0) target = $region61
    $region60: #{tpu_custom_call.1} parent=1 // pred_region
      %1368 = dma.done [#allocation5], 1024
    $region61: #{tpu_custom_call.1} parent=1 // pred_fallthru
      _
    %1369 = vsyncpa [#allocation4], 1
    %1370 = vsyncpa [#allocation7], 1
    %1371 = vsyncpa [#allocation10], 1
    %1372 = vsyncpa [#allocation5], 1

</llo_original>
